<compile_context>
chip_gen: v5e
topology: v5e:2x2
jax: 0.10.0
libtpu: 0.0.40
codegen_flags: <defaults>
</compile_context>

<pallas_src>
import math
import functools

import jax
import jax.numpy as jnp
import numpy as np
from jax.experimental import pallas as pl
from jax.experimental.pallas import tpu as pltpu


def _split_heads(t2, bblk, seq, nh, d):
    """(bblk*seq, nh*d) -> (bblk, nh, seq, d); lane (d) axis preserved."""
    return jnp.transpose(t2.reshape(bblk, seq, nh, d), (0, 2, 1, 3))


def _mha_kernel(*refs, num_heads, query_dim, value_dim, q_len, kv_len,
                has_mask, cross_attn):
    idx = 0
    x_ref = refs[idx]; idx += 1
    enc_ref = None
    if cross_attn:
        enc_ref = refs[idx]; idx += 1
    mask_ref = None
    if has_mask:
        mask_ref = refs[idx]; idx += 1
    (wqkv_ref, bqkv_ref, wo_ref, bo_ref,
     gamma_ref, beta_ref, out_ref) = refs[idx:]

    H, Dq, Dv = num_heads, query_dim, value_dim
    Tq, Tk = q_len, kv_len
    HDq, HDv = H * Dq, H * Dv

    x2 = x_ref[...]                       # (M, Din) bf16, rows = batch*time
    M = x2.shape[0]
    bblk = M // Tq
    BH = bblk * H

    wqkv = wqkv_ref[...]                  # (Din, 2*HDq + HDv) bf16, [Q|K|V],
    bqkv = bqkv_ref[...]                  # Q columns pre-scaled by 1/sqrt(Dq)

    if cross_attn:
        enc2 = enc_ref[...]               # (bblk*Tk, Din) bf16
        # Q from inputs; fused K|V (lane width HDq+HDv) from encoder states.
        q2 = jnp.dot(x2, wqkv[:, :HDq],
                     preferred_element_type=jnp.float32) + bqkv[:, :HDq]
        kv2 = jnp.dot(enc2, wqkv[:, HDq:],
                      preferred_element_type=jnp.float32) + bqkv[:, HDq:]
        qh = _split_heads(q2, bblk, Tq, H, Dq).reshape(BH, Tq, Dq)
        kh = _split_heads(kv2[:, :HDq], bblk, Tk, H, Dq).reshape(BH, Tk, Dq)
        vh = _split_heads(kv2[:, HDq:], bblk, Tk, H, Dv).reshape(BH, Tk, Dv)
    else:
        # Fully fused Q|K|V projection: one matmul with N = 2*HDq + HDv.
        qkv = jnp.dot(x2, wqkv, preferred_element_type=jnp.float32) + bqkv
        qk4 = _split_heads(qkv[:, :2 * HDq], bblk, Tq, 2 * H, Dq)
        qh = qk4[:, :H].reshape(BH, Tq, Dq)
        kh = qk4[:, H:].reshape(BH, Tq, Dq)
        vh = _split_heads(qkv[:, 2 * HDq:], bblk, Tq, H, Dv).reshape(BH, Tq, Dv)

    # bf16 operands into the MXU for the attention matmuls (f32 accumulate).
    qh = qh.astype(jnp.bfloat16)
    kh = kh.astype(jnp.bfloat16)
    vh = vh.astype(jnp.bfloat16)

    # Attention scores, batched over (batch*head); scale is already in Wq.
    scores = jnp.einsum('bqd,bkd->bqk', qh, kh,
                        preferred_element_type=jnp.float32)      # (BH, Tq, Tk)
    if has_mask:
        mask = mask_ref[...].astype(jnp.float32)                 # (bblk, Tq, Tk)
        scores = (scores.reshape(bblk, H, Tq, Tk)
                  + mask[:, None, :, :]).reshape(BH, Tq, Tk)

    # Numerically-stable softmax in fp32; denominator reciprocal on the EUP.
    scores = scores - jnp.max(scores, axis=-1, keepdims=True)
    p = jnp.exp(scores)
    p = p * pl.reciprocal(jnp.sum(p, axis=-1, keepdims=True), approx=True)
    # Attention-prob dropout (p=0.3): eval mode -> identity.

    ctx = jnp.einsum('bqk,bkd->bqd', p.astype(jnp.bfloat16), vh,
                     preferred_element_type=jnp.float32)         # (BH, Tq, Dv)
    ctx = jnp.transpose(ctx.reshape(bblk, H, Tq, Dv),
                        (0, 2, 1, 3)).reshape(M, HDv)

    # Output projection (Linear + Dropout(0.2) in eval -> Linear only).
    out = jnp.dot(ctx.astype(jnp.bfloat16), wo_ref[...],
                  preferred_element_type=jnp.float32) + bo_ref[...]

    # Residual + LayerNorm(eps=1e-5) in fp32.
    y = out + x2.astype(jnp.float32)
    mean = jnp.mean(y, axis=-1, keepdims=True)
    var = jnp.mean((y - mean) ** 2, axis=-1, keepdims=True)
    y = (y - mean) * jax.lax.rsqrt(var + 1e-5)
    y = y * gamma_ref[...] + beta_ref[...]

    # NOTE: with Dout >= 128 (real model sizes) this store is lane-dense; at
    # the toy Dout=32 it is a masked partial store.
    out_ref[...] = y.astype(out_ref.dtype)


def _vmem_budget_and_limit():
    """(~55% of VMEM capacity as block budget, explicit vmem_limit_bytes)."""
    try:
        cap = int(pltpu.get_tpu_info().vmem_capacity_bytes)
    except Exception:
        cap = 64 << 20          # conservative default (v7x per-TC capacity)
    return int(cap * 0.55), int(cap * 0.85)


def _vmem_bytes_estimate(bblk, T, Tk, Din, Dout, H, Dq, Dv, cross, has_mask):
    """Rough upper bound of VMEM resident per grid step for one batch block."""
    rows, rows_kv = bblk * T, bblk * Tk
    HDq, HDv = H * Dq, H * Dv
    fused_n = 2 * HDq + HDv
    BH = bblk * H
    est = 0
    # pipelined I/O blocks (x2 buffers)
    est += 2 * rows * Din * 2                              # x (bf16)
    if cross:
        est += 2 * rows_kv * Din * 2                       # encoder states (bf16)
    if has_mask:
        est += 2 * bblk * T * Tk * 2                       # additive mask (bf16)
    est += 2 * rows * Dout * 4                             # output (f32)
    # resident weights (single-buffered via pl.Buffered(1))
    est += Din * fused_n * 2 + fused_n * 4 + HDv * Dout * 2 + 3 * Dout * 4
    # in-kernel intermediates (qkv f32 + head-split copies, scores + p,
    # ctx + merged ctx, out / y)
    est += 2 * ((rows + rows_kv) if cross else rows) * fused_n * 4
    est += 2 * BH * T * Tk * 4
    est += BH * T * Dv * 4 + rows * HDv * 4 + 3 * rows * Dout * 4
    return est


def _pick_batch_block(B, T, Tk, Din, Dout, H, Dq, Dv, cross, has_mask, budget):
    """Largest batch-block divisor of B that fits the VMEM budget and keeps
    >= 2 grid steps (so both v7x TensorCores get work when B >= 2)."""
    best = None
    for d in range(1, B + 1):
        if B % d:
            continue
        if B >= 2 and B // d < 2:
            continue
        if _vmem_bytes_estimate(d, T, Tk, Din, Dout, H, Dq, Dv,
                                cross, has_mask) <= budget:
            best = d
    if best is None:
        raise NotImplementedError(
            "Even a single-batch block exceeds the per-step VMEM budget "
            f"({budget} bytes): the (B_blk*H, Tq, Tk) fp32 score tile does "
            "not fit. TODO(synk): flash-style KV-tiled online-softmax path.")
    return best


def _const_spec(shape, single_buffer):
    """BlockSpec for a grid-invariant operand (whole array, constant index)."""
    n = len(shape)
    index_map = lambda b: (0,) * n
    if single_buffer:
        return pl.BlockSpec(shape, index_map, pipeline_mode=pl.Buffered(1))
    return pl.BlockSpec(shape, index_map)


def mha_attention_forward(params, inputs, attention_mask=None,
                          encoder_hidden_states=None):
    """Pallas implementation of MHAttention.forward((inputs, mask, enc)).

    inputs: (B, Tq, input_dim); attention_mask: additive (B, Tq, Tk) or None
    (broadcast over heads); encoder_hidden_states: (B, Tk, input_dim) or None.
    Returns the normalized output tensor (B, Tq, output_dim).
    """
    B, T, Din = inputs.shape
    H = params['num_heads']
    Dq = params['query_dim']
    Dv = params['value_dim']
    Dout = params['wo'].shape[1]
    HDv = H * Dv
    assert Dout == Din, "residual add requires output_dim == input_dim"

    cross = encoder_hidden_states is not None
    Tk = encoder_hidden_states.shape[1] if cross else T
    has_mask = attention_mask is not None
    if has_mask:
        assert attention_mask.shape == (B, T, Tk)

    # Fused [Q | K | V] projection weights, bf16 for the MXU, with the
    # 1/sqrt(Dq) score scale folded into the Q columns/bias.
    # (In deployment these would be precomputed once, not per call.)
    scale = 1.0 / math.sqrt(Dq)
    wqkv = jnp.concatenate([params['wq'] * scale, params['wk'], params['wv']],
                           axis=1).astype(jnp.bfloat16)
    bqkv = jnp.concatenate([params['bq'] * scale, params['bk'], params['bv']],
                           axis=1).astype(jnp.float32)
    wo = params['wo'].astype(jnp.bfloat16)
    bo = params['bo'].astype(jnp.float32)
    gamma = params['gamma'].astype(jnp.float32)
    beta = params['beta'].astype(jnp.float32)

    budget, vmem_limit = _vmem_budget_and_limit()
    bblk = _pick_batch_block(B, T, Tk, Din, Dout, H, Dq, Dv,
                             cross, has_mask, budget)
    grid = (B // bblk,)
    rows = bblk * T
    rows_kv = bblk * Tk

    # Activations DMA'd in bf16 (half the HBM->VMEM traffic, MXU-ready).
    x2 = inputs.reshape(B * T, Din).astype(jnp.bfloat16)
    enc2 = (encoder_hidden_states.reshape(B * Tk, Din).astype(jnp.bfloat16)
            if cross else None)
    mask_bf = attention_mask.astype(jnp.bfloat16) if has_mask else None

    kernel = functools.partial(
        _mha_kernel, num_heads=H, query_dim=Dq, value_dim=Dv,
        q_len=T, kv_len=Tk, has_mask=has_mask, cross_attn=cross)

    def _call(single_buffer_weights):
        operands = [x2]
        in_specs = [pl.BlockSpec((rows, Din), lambda b: (b, 0))]
        if cross:
            operands.append(enc2)
            in_specs.append(pl.BlockSpec((rows_kv, Din), lambda b: (b, 0)))
        if has_mask:
            operands.append(mask_bf)
            in_specs.append(pl.BlockSpec((bblk, T, Tk), lambda b: (b, 0, 0)))
        weights = [wqkv, bqkv, wo, bo, gamma, beta]
        operands.extend(weights)
        in_specs += [_const_spec(w.shape, single_buffer_weights)
                     for w in weights]
        return pl.pallas_call(
            kernel,
            out_shape=jax.ShapeDtypeStruct((B * T, Dout), jnp.float32),
            grid_spec=pltpu.PrefetchScalarGridSpec(
                num_scalar_prefetch=0,
                grid=grid,
                in_specs=in_specs,
                out_specs=pl.BlockSpec((rows, Dout), lambda b: (b, 0)),
            ),
            compiler_params=pltpu.CompilerParams(
                dimension_semantics=("parallel",),
                vmem_limit_bytes=vmem_limit),
        )(*operands)

    try:
        out2 = _call(single_buffer_weights=True)
    except Exception:
        # Fallback if this JAX build rejects pipeline_mode=pl.Buffered(1).
        out2 = _call(single_buffer_weights=False)
    return out2.reshape(B, T, Dout)


def _reference_forward(params, inputs, attention_mask, enc):
    """Pure-JAX fp32 reference mirroring the PyTorch forward (eval mode)."""
    H, Dq, Dv = params['num_heads'], params['query_dim'], params['value_dim']
    B, T, _ = inputs.shape
    if enc is None:
        enc = inputs
    Tk = enc.shape[1]
    q = inputs @ params['wq'] + params['bq'][0]
    k = enc @ params['wk'] + params['bk'][0]
    v = enc @ params['wv'] + params['bv'][0]
    rs = lambda x, t, d: jnp.transpose(x.reshape(B, t, H, d), (0, 2, 1, 3))
    qh, kh, vh = rs(q, T, Dq), rs(k, Tk, Dq), rs(v, Tk, Dv)
    scores = jnp.einsum('bhtd,bhsd->bhts', qh, kh) / math.sqrt(Dq)
    if attention_mask is not None:
        scores = scores + attention_mask[:, None, :, :]
    p = jax.nn.softmax(scores, axis=-1)
    ctx = jnp.einsum('bhts,bhsd->bhtd', p, vh)
    ctx = jnp.transpose(ctx, (0, 2, 1, 3)).reshape(B, T, H * Dv)
    out = ctx @ params['wo'] + params['bo'][0]
    y = out + inputs
    mean = jnp.mean(y, axis=-1, keepdims=True)
    var = jnp.mean((y - mean) ** 2, axis=-1, keepdims=True)
    return (y - mean) / jnp.sqrt(var + 1e-5) * params['gamma'][0] + params['beta'][0]


def init_params(key, input_dim, query_dim, value_dim, output_dim, num_heads):
    ks = jax.random.split(key, 8)
    s = 0.05
    HDq, HDv = query_dim * num_heads, value_dim * num_heads
    return {
        'num_heads': num_heads, 'query_dim': query_dim, 'value_dim': value_dim,
        'wq': jax.random.normal(ks[0], (input_dim, HDq), jnp.float32) * s,
        'bq': jax.random.normal(ks[1], (1, HDq), jnp.float32) * s,
        'wk': jax.random.normal(ks[2], (input_dim, HDq), jnp.float32) * s,
        'bk': jax.random.normal(ks[3], (1, HDq), jnp.float32) * s,
        'wv': jax.random.normal(ks[4], (input_dim, HDv), jnp.float32) * s,
        'bv': jax.random.normal(ks[5], (1, HDv), jnp.float32) * s,
        'wo': jax.random.normal(ks[6], (HDv, output_dim), jnp.float32) * s,
        'bo': jax.random.normal(ks[7], (1, output_dim), jnp.float32) * s,
        'gamma': jnp.ones((1, output_dim), jnp.float32),
        'beta': jnp.zeros((1, output_dim), jnp.float32),
    }


if __name__ == "__main__":
    # Small shapes consistent with the module's forward:
    #   inputs: (Batch=2, Time=8, input_dim=32); output_dim == input_dim
    #   (required by the residual add in the original module).
    B, T = 2, 8
    input_dim = output_dim = 32
    query_dim = value_dim = 16
    num_heads = 4

    key = jax.random.PRNGKey(0)
    kp, kx, ke, km, ke2 = jax.random.split(key, 5)

    params = init_params(kp, input_dim, query_dim, value_dim,
                         output_dim, num_heads)

    inputs = jax.random.normal(kx, (B, T, input_dim), jnp.float32)
    encoder_hidden_states = jax.random.normal(ke, (B, T, input_dim), jnp.float32)
    attention_mask = jax.random.normal(km, (B, T, T), jnp.float32) * 0.1

    # Tolerance reflects bf16 MXU operands + the approx (EUP) softmax
    # reciprocal vs the pure-fp32 reference.
    TOL = dict(rtol=2e-2, atol=2e-2)

    # Cross-attention + mask path.
    out = jax.block_until_ready(
        mha_attention_forward(params, inputs, attention_mask,
                              encoder_hidden_states))
    ref = _reference_forward(params, inputs, attention_mask,
                             encoder_hidden_states)
    np.testing.assert_allclose(np.asarray(out), np.asarray(ref), **TOL)

    # Self-attention, no-mask path (no zero mask is materialized).
    out2 = jax.block_until_ready(mha_attention_forward(params, inputs))
    ref2 = _reference_forward(params, inputs, None, None)
    np.testing.assert_allclose(np.asarray(out2), np.asarray(ref2), **TOL)

    # Cross-attention with a longer encoder sequence (Tk != Tq) + mask.
    Tk = 16
    enc_long = jax.random.normal(ke2, (B, Tk, input_dim), jnp.float32)
    mask_long = jax.random.normal(km, (B, T, Tk), jnp.float32) * 0.1
    out3 = jax.block_until_ready(
        mha_attention_forward(params, inputs, mask_long, enc_long))
    ref3 = _reference_forward(params, inputs, mask_long, enc_long)
    np.testing.assert_allclose(np.asarray(out3), np.asarray(ref3), **TOL)

    print("KERNEL_OK")
</pallas_src>

<mosaic_0001>
module attributes {stable_mosaic.version = 11 : i64} {
  func.func @_mha_kernel(%arg0: i32, %arg1: memref<8x32xbf16, #tpu.memory_space<vmem>>, %arg2: memref<8x32xbf16, #tpu.memory_space<vmem>>, %arg3: memref<1x8x8xbf16, #tpu.memory_space<vmem>>, %arg4: memref<32x192xbf16, #tpu.memory_space<vmem>>, %arg5: memref<1x192xf32, #tpu.memory_space<vmem>>, %arg6: memref<64x32xbf16, #tpu.memory_space<vmem>>, %arg7: memref<1x32xf32, #tpu.memory_space<vmem>>, %arg8: memref<1x32xf32, #tpu.memory_space<vmem>>, %arg9: memref<1x32xf32, #tpu.memory_space<vmem>>, %arg10: memref<8x32xf32, #tpu.memory_space<vmem>>) attributes {dimension_semantics = [#tpu.dimension_semantics<parallel>], iteration_bounds = array<i64: 2>, scalar_prefetch = 0 : i64, scratch_operands = 0 : i64, tpu.core_type = #tpu.core_type<tc>, window_params = [{transform_indices = @transform_0, window_bounds = array<i64: 8, 32>}, {transform_indices = @transform_1, window_bounds = array<i64: 8, 32>}, {transform_indices = @transform_2, window_bounds = array<i64: 1, 8, 8>}, {pipeline_mode = #tpu.pipeline_mode<synchronous>, transform_indices = @transform_3, window_bounds = array<i64: 32, 192>}, {pipeline_mode = #tpu.pipeline_mode<synchronous>, transform_indices = @transform_4, window_bounds = array<i64: 1, 192>}, {pipeline_mode = #tpu.pipeline_mode<synchronous>, transform_indices = @transform_5, window_bounds = array<i64: 64, 32>}, {pipeline_mode = #tpu.pipeline_mode<synchronous>, transform_indices = @transform_6, window_bounds = array<i64: 1, 32>}, {pipeline_mode = #tpu.pipeline_mode<synchronous>, transform_indices = @transform_7, window_bounds = array<i64: 1, 32>}, {pipeline_mode = #tpu.pipeline_mode<synchronous>, transform_indices = @transform_8, window_bounds = array<i64: 1, 32>}, {transform_indices = @transform_9, window_bounds = array<i64: 8, 32>}]} {
    %c0 = arith.constant 0 : index
    %c0_0 = arith.constant 0 : index
    %0 = vector.load %arg1[%c0, %c0_0] : memref<8x32xbf16, #tpu.memory_space<vmem>>, vector<8x32xbf16>
    %c0_1 = arith.constant 0 : index
    %c0_2 = arith.constant 0 : index
    %1 = vector.load %arg4[%c0_1, %c0_2] : memref<32x192xbf16, #tpu.memory_space<vmem>>, vector<32x192xbf16>
    %c0_3 = arith.constant 0 : index
    %c0_4 = arith.constant 0 : index
    %2 = vector.load %arg5[%c0_3, %c0_4] : memref<1x192xf32, #tpu.memory_space<vmem>>, vector<1x192xf32>
    %c0_5 = arith.constant 0 : index
    %c0_6 = arith.constant 0 : index
    %3 = vector.load %arg2[%c0_5, %c0_6] : memref<8x32xbf16, #tpu.memory_space<vmem>>, vector<8x32xbf16>
    %4 = vector.extract_strided_slice %1 {offsets = [0, 0], sizes = [32, 64], strides = [1, 1]} : vector<32x192xbf16> to vector<32x64xbf16>
    %cst = arith.constant dense<0.000000e+00> : vector<8x64xf32>
    %5 = tpu.matmul %0, %4, %cst {dimension_numbers = #tpu.dot_dimension_numbers<[1], [0], [0], [1], [0, 0, 1, 1], [], []>} : vector<8x32xbf16>, vector<32x64xbf16>, vector<8x64xf32> -> vector<8x64xf32>
    %6 = vector.extract_strided_slice %2 {offsets = [0, 0], sizes = [1, 64], strides = [1, 1]} : vector<1x192xf32> to vector<1x64xf32>
    %7 = vector.broadcast %6 : vector<1x64xf32> to vector<8x64xf32>
    %8 = arith.addf %5, %7 : vector<8x64xf32>
    %9 = vector.extract_strided_slice %1 {offsets = [0, 64], sizes = [32, 128], strides = [1, 1]} : vector<32x192xbf16> to vector<32x128xbf16>
    %cst_7 = arith.constant dense<0.000000e+00> : vector<8x128xf32>
    %10 = tpu.matmul %3, %9, %cst_7 {dimension_numbers = #tpu.dot_dimension_numbers<[1], [0], [0], [1], [0, 0, 1, 1], [], []>} : vector<8x32xbf16>, vector<32x128xbf16>, vector<8x128xf32> -> vector<8x128xf32>
    %11 = vector.extract_strided_slice %2 {offsets = [0, 64], sizes = [1, 128], strides = [1, 1]} : vector<1x192xf32> to vector<1x128xf32>
    %12 = vector.broadcast %11 : vector<1x128xf32> to vector<8x128xf32>
    %13 = arith.addf %10, %12 : vector<8x128xf32>
    %14 = vector.shape_cast %8 : vector<8x64xf32> to vector<1x8x4x16xf32>
    %15 = tpu.transpose %14, [0, 2, 1, 3] : vector<1x8x4x16xf32> -> vector<1x4x8x16xf32>
    %16 = vector.shape_cast %15 : vector<1x4x8x16xf32> to vector<4x8x16xf32>
    %17 = vector.extract_strided_slice %13 {offsets = [0, 0], sizes = [8, 64], strides = [1, 1]} : vector<8x128xf32> to vector<8x64xf32>
    %18 = vector.shape_cast %17 : vector<8x64xf32> to vector<1x8x4x16xf32>
    %19 = tpu.transpose %18, [0, 2, 1, 3] : vector<1x8x4x16xf32> -> vector<1x4x8x16xf32>
    %20 = vector.shape_cast %19 : vector<1x4x8x16xf32> to vector<4x8x16xf32>
    %21 = vector.extract_strided_slice %13 {offsets = [0, 64], sizes = [8, 64], strides = [1, 1]} : vector<8x128xf32> to vector<8x64xf32>
    %22 = vector.shape_cast %21 : vector<8x64xf32> to vector<1x8x4x16xf32>
    %23 = tpu.transpose %22, [0, 2, 1, 3] : vector<1x8x4x16xf32> -> vector<1x4x8x16xf32>
    %24 = vector.shape_cast %23 : vector<1x4x8x16xf32> to vector<4x8x16xf32>
    %25 = arith.truncf %16 : vector<4x8x16xf32> to vector<4x8x16xbf16>
    %26 = arith.truncf %20 : vector<4x8x16xf32> to vector<4x8x16xbf16>
    %27 = arith.truncf %24 : vector<4x8x16xf32> to vector<4x8x16xbf16>
    "tpu.trace_start"() <{level = 10 : i32, message = "bqd,bkd->bqk"}> : () -> ()
    %cst_8 = arith.constant dense<0.000000e+00> : vector<4x8x8xf32>
    %28 = tpu.matmul %25, %26, %cst_8 {dimension_numbers = #tpu.dot_dimension_numbers<[2], [2], [1], [1], [0, 0, 0, 1, 1, 1], [0], [0]>} : vector<4x8x16xbf16>, vector<4x8x16xbf16>, vector<4x8x8xf32> -> vector<4x8x8xf32>
    "tpu.trace_stop"() : () -> ()
    %c0_9 = arith.constant 0 : index
    %c0_10 = arith.constant 0 : index
    %c0_11 = arith.constant 0 : index
    %29 = vector.load %arg3[%c0_9, %c0_10, %c0_11] : memref<1x8x8xbf16, #tpu.memory_space<vmem>>, vector<1x8x8xbf16>
    %30 = arith.extf %29 : vector<1x8x8xbf16> to vector<1x8x8xf32>
    %31 = vector.shape_cast %28 : vector<4x8x8xf32> to vector<1x4x8x8xf32>
    %32 = vector.shape_cast %30 : vector<1x8x8xf32> to vector<1x1x8x8xf32>
    %33 = vector.broadcast %32 : vector<1x1x8x8xf32> to vector<1x4x8x8xf32>
    %34 = arith.addf %31, %33 : vector<1x4x8x8xf32>
    %35 = vector.shape_cast %34 : vector<1x4x8x8xf32> to vector<4x8x8xf32>
    %cst_12 = arith.constant dense<0xFF800000> : vector<4x8xf32>
    %36 = vector.multi_reduction <maximumf>, %35, %cst_12 [2] : vector<4x8x8xf32> to vector<4x8xf32>
    %37 = vector.shape_cast %36 : vector<4x8xf32> to vector<4x8x1xf32>
    %38 = vector.broadcast %37 : vector<4x8x1xf32> to vector<4x8x8xf32>
    %39 = arith.subf %35, %38 : vector<4x8x8xf32>
    %40 = math.exp %39 : vector<4x8x8xf32>
    %cst_13 = arith.constant dense<0.000000e+00> : vector<4x8xf32>
    %41 = vector.multi_reduction <add>, %40, %cst_13 [2] : vector<4x8x8xf32> to vector<4x8xf32>
    %42 = vector.shape_cast %41 : vector<4x8xf32> to vector<4x8x1xf32>
    %43 = tpu.reciprocal %42 {approx = true} : vector<4x8x1xf32> -> vector<4x8x1xf32>
    %44 = vector.broadcast %43 : vector<4x8x1xf32> to vector<4x8x8xf32>
    %45 = arith.mulf %40, %44 : vector<4x8x8xf32>
    %46 = arith.truncf %45 : vector<4x8x8xf32> to vector<4x8x8xbf16>
    "tpu.trace_start"() <{level = 10 : i32, message = "bqk,bkd->bqd"}> : () -> ()
    %cst_14 = arith.constant dense<0.000000e+00> : vector<4x8x16xf32>
    %47 = tpu.matmul %46, %27, %cst_14 {dimension_numbers = #tpu.dot_dimension_numbers<[2], [1], [1], [2], [0, 0, 0, 1, 1, 2], [0], [0]>} : vector<4x8x8xbf16>, vector<4x8x16xbf16>, vector<4x8x16xf32> -> vector<4x8x16xf32>
    "tpu.trace_stop"() : () -> ()
    %48 = vector.shape_cast %47 : vector<4x8x16xf32> to vector<1x4x8x16xf32>
    %49 = tpu.transpose %48, [0, 2, 1, 3] : vector<1x4x8x16xf32> -> vector<1x8x4x16xf32>
    %50 = vector.shape_cast %49 : vector<1x8x4x16xf32> to vector<8x64xf32>
    %51 = arith.truncf %50 : vector<8x64xf32> to vector<8x64xbf16>
    %c0_15 = arith.constant 0 : index
    %c0_16 = arith.constant 0 : index
    %52 = vector.load %arg6[%c0_15, %c0_16] : memref<64x32xbf16, #tpu.memory_space<vmem>>, vector<64x32xbf16>
    %cst_17 = arith.constant dense<0.000000e+00> : vector<8x32xf32>
    %53 = tpu.matmul %51, %52, %cst_17 {dimension_numbers = #tpu.dot_dimension_numbers<[1], [0], [0], [1], [0, 0, 1, 1], [], []>} : vector<8x64xbf16>, vector<64x32xbf16>, vector<8x32xf32> -> vector<8x32xf32>
    %c0_18 = arith.constant 0 : index
    %c0_19 = arith.constant 0 : index
    %54 = vector.load %arg7[%c0_18, %c0_19] : memref<1x32xf32, #tpu.memory_space<vmem>>, vector<1x32xf32>
    %55 = vector.broadcast %54 : vector<1x32xf32> to vector<8x32xf32>
    %56 = arith.addf %53, %55 : vector<8x32xf32>
    %57 = arith.extf %0 : vector<8x32xbf16> to vector<8x32xf32>
    %58 = arith.addf %56, %57 : vector<8x32xf32>
    %cst_20 = arith.constant dense<0.000000e+00> : vector<8xf32>
    %59 = vector.multi_reduction <add>, %58, %cst_20 [1] : vector<8x32xf32> to vector<8xf32>
    %60 = vector.shape_cast %59 : vector<8xf32> to vector<8x1xf32>
    %cst_21 = arith.constant 3.200000e+01 : f32
    %61 = vector.broadcast %cst_21 : f32 to vector<8x1xf32>
    %62 = arith.divf %60, %61 : vector<8x1xf32>
    %63 = vector.broadcast %62 : vector<8x1xf32> to vector<8x32xf32>
    %64 = arith.subf %58, %63 : vector<8x32xf32>
    %65 = arith.mulf %64, %64 : vector<8x32xf32>
    %cst_22 = arith.constant dense<0.000000e+00> : vector<8xf32>
    %66 = vector.multi_reduction <add>, %65, %cst_22 [1] : vector<8x32xf32> to vector<8xf32>
    %67 = vector.shape_cast %66 : vector<8xf32> to vector<8x1xf32>
    %cst_23 = arith.constant 3.200000e+01 : f32
    %68 = vector.broadcast %cst_23 : f32 to vector<8x1xf32>
    %69 = arith.divf %67, %68 : vector<8x1xf32>
    %70 = vector.broadcast %62 : vector<8x1xf32> to vector<8x32xf32>
    %71 = arith.subf %58, %70 : vector<8x32xf32>
    %cst_24 = arith.constant 9.99999974E-6 : f32
    %72 = vector.broadcast %cst_24 : f32 to vector<8x1xf32>
    %73 = arith.addf %69, %72 : vector<8x1xf32>
    %74 = math.rsqrt %73 : vector<8x1xf32>
    %75 = vector.broadcast %74 : vector<8x1xf32> to vector<8x32xf32>
    %76 = arith.mulf %71, %75 : vector<8x32xf32>
    %c0_25 = arith.constant 0 : index
    %c0_26 = arith.constant 0 : index
    %77 = vector.load %arg8[%c0_25, %c0_26] : memref<1x32xf32, #tpu.memory_space<vmem>>, vector<1x32xf32>
    %78 = vector.broadcast %77 : vector<1x32xf32> to vector<8x32xf32>
    %79 = arith.mulf %76, %78 : vector<8x32xf32>
    %c0_27 = arith.constant 0 : index
    %c0_28 = arith.constant 0 : index
    %80 = vector.load %arg9[%c0_27, %c0_28] : memref<1x32xf32, #tpu.memory_space<vmem>>, vector<1x32xf32>
    %81 = vector.broadcast %80 : vector<1x32xf32> to vector<8x32xf32>
    %82 = arith.addf %79, %81 : vector<8x32xf32>
    %c0_29 = arith.constant 0 : index
    %c0_30 = arith.constant 0 : index
    %83 = vector.load %arg10[%c0_29, %c0_30] : memref<8x32xf32, #tpu.memory_space<vmem>>, vector<8x32xf32>
    tpu.vector_store %arg10[%c0_29, %c0_30], %82 {strides = array<i32>} : memref<8x32xf32, #tpu.memory_space<vmem>>, vector<8x32xf32>,
    return
  }
  func.func @transform_0(%arg0: i32) -> (i32, i32) {
    %c0_i32 = arith.constant 0 : i32
    %c0_i32_0 = arith.constant 0 : i32
    return %arg0, %c0_i32 : i32, i32
  }
  func.func @transform_1(%arg0: i32) -> (i32, i32) {
    %c0_i32 = arith.constant 0 : i32
    %c0_i32_0 = arith.constant 0 : i32
    return %arg0, %c0_i32 : i32, i32
  }
  func.func @transform_2(%arg0: i32) -> (i32, i32, i32) {
    %c0_i32 = arith.constant 0 : i32
    %c0_i32_0 = arith.constant 0 : i32
    %c0_i32_1 = arith.constant 0 : i32
    return %arg0, %c0_i32, %c0_i32_0 : i32, i32, i32
  }
  func.func @transform_3(%arg0: i32) -> (i32, i32) {
    %c0_i32 = arith.constant 0 : i32
    %c0_i32_0 = arith.constant 0 : i32
    %c0_i32_1 = arith.constant 0 : i32
    return %c0_i32, %c0_i32_0 : i32, i32
  }
  func.func @transform_4(%arg0: i32) -> (i32, i32) {
    %c0_i32 = arith.constant 0 : i32
    %c0_i32_0 = arith.constant 0 : i32
    %c0_i32_1 = arith.constant 0 : i32
    return %c0_i32, %c0_i32_0 : i32, i32
  }
  func.func @transform_5(%arg0: i32) -> (i32, i32) {
    %c0_i32 = arith.constant 0 : i32
    %c0_i32_0 = arith.constant 0 : i32
    %c0_i32_1 = arith.constant 0 : i32
    return %c0_i32, %c0_i32_0 : i32, i32
  }
  func.func @transform_6(%arg0: i32) -> (i32, i32) {
    %c0_i32 = arith.constant 0 : i32
    %c0_i32_0 = arith.constant 0 : i32
    %c0_i32_1 = arith.constant 0 : i32
    return %c0_i32, %c0_i32_0 : i32, i32
  }
  func.func @transform_7(%arg0: i32) -> (i32, i32) {
    %c0_i32 = arith.constant 0 : i32
    %c0_i32_0 = arith.constant 0 : i32
    %c0_i32_1 = arith.constant 0 : i32
    return %c0_i32, %c0_i32_0 : i32, i32
  }
  func.func @transform_8(%arg0: i32) -> (i32, i32) {
    %c0_i32 = arith.constant 0 : i32
    %c0_i32_0 = arith.constant 0 : i32
    %c0_i32_1 = arith.constant 0 : i32
    return %c0_i32, %c0_i32_0 : i32, i32
  }
  func.func @transform_9(%arg0: i32) -> (i32, i32) {
    %c0_i32 = arith.constant 0 : i32
    %c0_i32_0 = arith.constant 0 : i32
    return %arg0, %c0_i32 : i32, i32
  }
}

module attributes {stable_mosaic.version = 11 : i64} {
  func.func @_mha_kernel(%arg0: i32, %arg1: memref<8x32xbf16, #tpu.memory_space<vmem>>, %arg2: memref<8x32xbf16, #tpu.memory_space<vmem>>, %arg3: memref<1x8x8xbf16, #tpu.memory_space<vmem>>, %arg4: memref<32x192xbf16, #tpu.memory_space<vmem>>, %arg5: memref<1x192xf32, #tpu.memory_space<vmem>>, %arg6: memref<64x32xbf16, #tpu.memory_space<vmem>>, %arg7: memref<1x32xf32, #tpu.memory_space<vmem>>, %arg8: memref<1x32xf32, #tpu.memory_space<vmem>>, %arg9: memref<1x32xf32, #tpu.memory_space<vmem>>, %arg10: memref<8x32xf32, #tpu.memory_space<vmem>>) attributes {dimension_semantics = [#tpu.dimension_semantics<parallel>], iteration_bounds = array<i64: 2>, scalar_prefetch = 0 : i64, scratch_operands = 0 : i64, tpu.core_type = #tpu.core_type<tc>, window_params = [{transform_indices = @transform_0, window_bounds = array<i64: 8, 32>}, {transform_indices = @transform_1, window_bounds = array<i64: 8, 32>}, {transform_indices = @transform_2, window_bounds = array<i64: 1, 8, 8>}, {pipeline_mode = #tpu.pipeline_mode<synchronous>, transform_indices = @transform_3, window_bounds = array<i64: 32, 192>}, {pipeline_mode = #tpu.pipeline_mode<synchronous>, transform_indices = @transform_4, window_bounds = array<i64: 1, 192>}, {pipeline_mode = #tpu.pipeline_mode<synchronous>, transform_indices = @transform_5, window_bounds = array<i64: 64, 32>}, {pipeline_mode = #tpu.pipeline_mode<synchronous>, transform_indices = @transform_6, window_bounds = array<i64: 1, 32>}, {pipeline_mode = #tpu.pipeline_mode<synchronous>, transform_indices = @transform_7, window_bounds = array<i64: 1, 32>}, {pipeline_mode = #tpu.pipeline_mode<synchronous>, transform_indices = @transform_8, window_bounds = array<i64: 1, 32>}, {transform_indices = @transform_9, window_bounds = array<i64: 8, 32>}]} {
    %c0 = arith.constant 0 : index
    %c0_0 = arith.constant 0 : index
    %0 = vector.load %arg1[%c0, %c0_0] : memref<8x32xbf16, #tpu.memory_space<vmem>>, vector<8x32xbf16>
    %c0_1 = arith.constant 0 : index
    %c0_2 = arith.constant 0 : index
    %1 = vector.load %arg4[%c0_1, %c0_2] : memref<32x192xbf16, #tpu.memory_space<vmem>>, vector<32x192xbf16>
    %c0_3 = arith.constant 0 : index
    %c0_4 = arith.constant 0 : index
    %2 = vector.load %arg5[%c0_3, %c0_4] : memref<1x192xf32, #tpu.memory_space<vmem>>, vector<1x192xf32>
    %c0_5 = arith.constant 0 : index
    %c0_6 = arith.constant 0 : index
    %3 = vector.load %arg2[%c0_5, %c0_6] : memref<8x32xbf16, #tpu.memory_space<vmem>>, vector<8x32xbf16>
    %4 = vector.extract_strided_slice %1 {offsets = [0, 0], sizes = [32, 64], strides = [1, 1]} : vector<32x192xbf16> to vector<32x64xbf16>
    %cst = arith.constant dense<0.000000e+00> : vector<8x64xf32>
    %5 = tpu.matmul %0, %4, %cst {dimension_numbers = #tpu.dot_dimension_numbers<[1], [0], [0], [1], [0, 0, 1, 1], [], []>} : vector<8x32xbf16>, vector<32x64xbf16>, vector<8x64xf32> -> vector<8x64xf32>
    %6 = vector.extract_strided_slice %2 {offsets = [0, 0], sizes = [1, 64], strides = [1, 1]} : vector<1x192xf32> to vector<1x64xf32>
    %7 = vector.broadcast %6 : vector<1x64xf32> to vector<8x64xf32>
    %8 = arith.addf %5, %7 : vector<8x64xf32>
    %9 = vector.extract_strided_slice %1 {offsets = [0, 64], sizes = [32, 128], strides = [1, 1]} : vector<32x192xbf16> to vector<32x128xbf16>
    %cst_7 = arith.constant dense<0.000000e+00> : vector<8x128xf32>
    %10 = tpu.matmul %3, %9, %cst_7 {dimension_numbers = #tpu.dot_dimension_numbers<[1], [0], [0], [1], [0, 0, 1, 1], [], []>} : vector<8x32xbf16>, vector<32x128xbf16>, vector<8x128xf32> -> vector<8x128xf32>
    %11 = vector.extract_strided_slice %2 {offsets = [0, 64], sizes = [1, 128], strides = [1, 1]} : vector<1x192xf32> to vector<1x128xf32>
    %12 = vector.broadcast %11 : vector<1x128xf32> to vector<8x128xf32>
    %13 = arith.addf %10, %12 : vector<8x128xf32>
    %14 = vector.shape_cast %8 : vector<8x64xf32> to vector<1x8x4x16xf32>
    %15 = tpu.transpose %14, [0, 2, 1, 3] : vector<1x8x4x16xf32> -> vector<1x4x8x16xf32>
    %16 = vector.shape_cast %15 : vector<1x4x8x16xf32> to vector<4x8x16xf32>
    %17 = vector.extract_strided_slice %13 {offsets = [0, 0], sizes = [8, 64], strides = [1, 1]} : vector<8x128xf32> to vector<8x64xf32>
    %18 = vector.shape_cast %17 : vector<8x64xf32> to vector<1x8x4x16xf32>
    %19 = tpu.transpose %18, [0, 2, 1, 3] : vector<1x8x4x16xf32> -> vector<1x4x8x16xf32>
    %20 = vector.shape_cast %19 : vector<1x4x8x16xf32> to vector<4x8x16xf32>
    %21 = vector.extract_strided_slice %13 {offsets = [0, 64], sizes = [8, 64], strides = [1, 1]} : vector<8x128xf32> to vector<8x64xf32>
    %22 = vector.shape_cast %21 : vector<8x64xf32> to vector<1x8x4x16xf32>
    %23 = tpu.transpose %22, [0, 2, 1, 3] : vector<1x8x4x16xf32> -> vector<1x4x8x16xf32>
    %24 = vector.shape_cast %23 : vector<1x4x8x16xf32> to vector<4x8x16xf32>
    %25 = arith.truncf %16 : vector<4x8x16xf32> to vector<4x8x16xbf16>
    %26 = arith.truncf %20 : vector<4x8x16xf32> to vector<4x8x16xbf16>
    %27 = arith.truncf %24 : vector<4x8x16xf32> to vector<4x8x16xbf16>
    "tpu.trace_start"() <{level = 10 : i32, message = "bqd,bkd->bqk"}> : () -> ()
    %cst_8 = arith.constant dense<0.000000e+00> : vector<4x8x8xf32>
    %28 = tpu.matmul %25, %26, %cst_8 {dimension_numbers = #tpu.dot_dimension_numbers<[2], [2], [1], [1], [0, 0, 0, 1, 1, 1], [0], [0]>} : vector<4x8x16xbf16>, vector<4x8x16xbf16>, vector<4x8x8xf32> -> vector<4x8x8xf32>
    "tpu.trace_stop"() : () -> ()
    %c0_9 = arith.constant 0 : index
    %c0_10 = arith.constant 0 : index
    %c0_11 = arith.constant 0 : index
    %29 = vector.load %arg3[%c0_9, %c0_10, %c0_11] : memref<1x8x8xbf16, #tpu.memory_space<vmem>>, vector<1x8x8xbf16>
    %30 = arith.extf %29 : vector<1x8x8xbf16> to vector<1x8x8xf32>
    %31 = vector.shape_cast %28 : vector<4x8x8xf32> to vector<1x4x8x8xf32>
    %32 = vector.shape_cast %30 : vector<1x8x8xf32> to vector<1x1x8x8xf32>
    %33 = vector.broadcast %32 : vector<1x1x8x8xf32> to vector<1x4x8x8xf32>
    %34 = arith.addf %31, %33 : vector<1x4x8x8xf32>
    %35 = vector.shape_cast %34 : vector<1x4x8x8xf32> to vector<4x8x8xf32>
    %cst_12 = arith.constant dense<0xFF800000> : vector<4x8xf32>
    %36 = vector.multi_reduction <maximumf>, %35, %cst_12 [2] : vector<4x8x8xf32> to vector<4x8xf32>
    %37 = vector.shape_cast %36 : vector<4x8xf32> to vector<4x8x1xf32>
    %38 = vector.broadcast %37 : vector<4x8x1xf32> to vector<4x8x8xf32>
    %39 = arith.subf %35, %38 : vector<4x8x8xf32>
    %40 = math.exp %39 : vector<4x8x8xf32>
    %cst_13 = arith.constant dense<0.000000e+00> : vector<4x8xf32>
    %41 = vector.multi_reduction <add>, %40, %cst_13 [2] : vector<4x8x8xf32> to vector<4x8xf32>
    %42 = vector.shape_cast %41 : vector<4x8xf32> to vector<4x8x1xf32>
    %43 = tpu.reciprocal %42 {approx = true} : vector<4x8x1xf32> -> vector<4x8x1xf32>
    %44 = vector.broadcast %43 : vector<4x8x1xf32> to vector<4x8x8xf32>
    %45 = arith.mulf %40, %44 : vector<4x8x8xf32>
    %46 = arith.truncf %45 : vector<4x8x8xf32> to vector<4x8x8xbf16>
    "tpu.trace_start"() <{level = 10 : i32, message = "bqk,bkd->bqd"}> : () -> ()
    %cst_14 = arith.constant dense<0.000000e+00> : vector<4x8x16xf32>
    %47 = tpu.matmul %46, %27, %cst_14 {dimension_numbers = #tpu.dot_dimension_numbers<[2], [1], [1], [2], [0, 0, 0, 1, 1, 2], [0], [0]>} : vector<4x8x8xbf16>, vector<4x8x16xbf16>, vector<4x8x16xf32> -> vector<4x8x16xf32>
    "tpu.trace_stop"() : () -> ()
    %48 = vector.shape_cast %47 : vector<4x8x16xf32> to vector<1x4x8x16xf32>
    %49 = tpu.transpose %48, [0, 2, 1, 3] : vector<1x4x8x16xf32> -> vector<1x8x4x16xf32>
    %50 = vector.shape_cast %49 : vector<1x8x4x16xf32> to vector<8x64xf32>
    %51 = arith.truncf %50 : vector<8x64xf32> to vector<8x64xbf16>
    %c0_15 = arith.constant 0 : index
    %c0_16 = arith.constant 0 : index
    %52 = vector.load %arg6[%c0_15, %c0_16] : memref<64x32xbf16, #tpu.memory_space<vmem>>, vector<64x32xbf16>
    %cst_17 = arith.constant dense<0.000000e+00> : vector<8x32xf32>
    %53 = tpu.matmul %51, %52, %cst_17 {dimension_numbers = #tpu.dot_dimension_numbers<[1], [0], [0], [1], [0, 0, 1, 1], [], []>} : vector<8x64xbf16>, vector<64x32xbf16>, vector<8x32xf32> -> vector<8x32xf32>
    %c0_18 = arith.constant 0 : index
    %c0_19 = arith.constant 0 : index
    %54 = vector.load %arg7[%c0_18, %c0_19] : memref<1x32xf32, #tpu.memory_space<vmem>>, vector<1x32xf32>
    %55 = vector.broadcast %54 : vector<1x32xf32> to vector<8x32xf32>
    %56 = arith.addf %53, %55 : vector<8x32xf32>
    %57 = arith.extf %0 : vector<8x32xbf16> to vector<8x32xf32>
    %58 = arith.addf %56, %57 : vector<8x32xf32>
    %cst_20 = arith.constant dense<0.000000e+00> : vector<8xf32>
    %59 = vector.multi_reduction <add>, %58, %cst_20 [1] : vector<8x32xf32> to vector<8xf32>
    %60 = vector.shape_cast %59 : vector<8xf32> to vector<8x1xf32>
    %cst_21 = arith.constant 3.200000e+01 : f32
    %61 = vector.broadcast %cst_21 : f32 to vector<8x1xf32>
    %62 = arith.divf %60, %61 : vector<8x1xf32>
    %63 = vector.broadcast %62 : vector<8x1xf32> to vector<8x32xf32>
    %64 = arith.subf %58, %63 : vector<8x32xf32>
    %65 = arith.mulf %64, %64 : vector<8x32xf32>
    %cst_22 = arith.constant dense<0.000000e+00> : vector<8xf32>
    %66 = vector.multi_reduction <add>, %65, %cst_22 [1] : vector<8x32xf32> to vector<8xf32>
    %67 = vector.shape_cast %66 : vector<8xf32> to vector<8x1xf32>
    %cst_23 = arith.constant 3.200000e+01 : f32
    %68 = vector.broadcast %cst_23 : f32 to vector<8x1xf32>
    %69 = arith.divf %67, %68 : vector<8x1xf32>
    %70 = vector.broadcast %62 : vector<8x1xf32> to vector<8x32xf32>
    %71 = arith.subf %58, %70 : vector<8x32xf32>
    %cst_24 = arith.constant 9.99999974E-6 : f32
    %72 = vector.broadcast %cst_24 : f32 to vector<8x1xf32>
    %73 = arith.addf %69, %72 : vector<8x1xf32>
    %74 = math.rsqrt %73 : vector<8x1xf32>
    %75 = vector.broadcast %74 : vector<8x1xf32> to vector<8x32xf32>
    %76 = arith.mulf %71, %75 : vector<8x32xf32>
    %c0_25 = arith.constant 0 : index
    %c0_26 = arith.constant 0 : index
    %77 = vector.load %arg8[%c0_25, %c0_26] : memref<1x32xf32, #tpu.memory_space<vmem>>, vector<1x32xf32>
    %78 = vector.broadcast %77 : vector<1x32xf32> to vector<8x32xf32>
    %79 = arith.mulf %76, %78 : vector<8x32xf32>
    %c0_27 = arith.constant 0 : index
    %c0_28 = arith.constant 0 : index
    %80 = vector.load %arg9[%c0_27, %c0_28] : memref<1x32xf32, #tpu.memory_space<vmem>>, vector<1x32xf32>
    %81 = vector.broadcast %80 : vector<1x32xf32> to vector<8x32xf32>
    %82 = arith.addf %79, %81 : vector<8x32xf32>
    %c0_29 = arith.constant 0 : index
    %c0_30 = arith.constant 0 : index
    %83 = vector.load %arg10[%c0_29, %c0_30] : memref<8x32xf32, #tpu.memory_space<vmem>>, vector<8x32xf32>
    tpu.vector_store %arg10[%c0_29, %c0_30], %82 {strides = array<i32>} : memref<8x32xf32, #tpu.memory_space<vmem>>, vector<8x32xf32>,
    return
  }
  func.func @transform_0(%arg0: i32) -> (i32, i32) {
    %c0_i32 = arith.constant 0 : i32
    %c0_i32_0 = arith.constant 0 : i32
    return %arg0, %c0_i32 : i32, i32
  }
  func.func @transform_1(%arg0: i32) -> (i32, i32) {
    %c0_i32 = arith.constant 0 : i32
    %c0_i32_0 = arith.constant 0 : i32
    return %arg0, %c0_i32 : i32, i32
  }
  func.func @transform_2(%arg0: i32) -> (i32, i32, i32) {
    %c0_i32 = arith.constant 0 : i32
    %c0_i32_0 = arith.constant 0 : i32
    %c0_i32_1 = arith.constant 0 : i32
    return %arg0, %c0_i32, %c0_i32_0 : i32, i32, i32
  }
  func.func @transform_3(%arg0: i32) -> (i32, i32) {
    %c0_i32 = arith.constant 0 : i32
    %c0_i32_0 = arith.constant 0 : i32
    %c0_i32_1 = arith.constant 0 : i32
    return %c0_i32, %c0_i32_0 : i32, i32
  }
  func.func @transform_4(%arg0: i32) -> (i32, i32) {
    %c0_i32 = arith.constant 0 : i32
    %c0_i32_0 = arith.constant 0 : i32
    %c0_i32_1 = arith.constant 0 : i32
    return %c0_i32, %c0_i32_0 : i32, i32
  }
  func.func @transform_5(%arg0: i32) -> (i32, i32) {
    %c0_i32 = arith.constant 0 : i32
    %c0_i32_0 = arith.constant 0 : i32
    %c0_i32_1 = arith.constant 0 : i32
    return %c0_i32, %c0_i32_0 : i32, i32
  }
  func.func @transform_6(%arg0: i32) -> (i32, i32) {
    %c0_i32 = arith.constant 0 : i32
    %c0_i32_0 = arith.constant 0 : i32
    %c0_i32_1 = arith.constant 0 : i32
    return %c0_i32, %c0_i32_0 : i32, i32
  }
  func.func @transform_7(%arg0: i32) -> (i32, i32) {
    %c0_i32 = arith.constant 0 : i32
    %c0_i32_0 = arith.constant 0 : i32
    %c0_i32_1 = arith.constant 0 : i32
    return %c0_i32, %c0_i32_0 : i32, i32
  }
  func.func @transform_8(%arg0: i32) -> (i32, i32) {
    %c0_i32 = arith.constant 0 : i32
    %c0_i32_0 = arith.constant 0 : i32
    %c0_i32_1 = arith.constant 0 : i32
    return %c0_i32, %c0_i32_0 : i32, i32
  }
  func.func @transform_9(%arg0: i32) -> (i32, i32) {
    %c0_i32 = arith.constant 0 : i32
    %c0_i32_0 = arith.constant 0 : i32
    return %arg0, %c0_i32 : i32, i32
  }
}

</mosaic_0001>

<llo_original>
// kernel: tpu_custom_call.1
$region0: #{tpu_custom_call.1}
  #allocation0 [shape = 'u32[]', space=smem, size = 0x4, offset = 0x4, fixed_abs, tag = 'smem constant byte address 0x4 - core index']
  #allocation1 [shape = 'u32[72,128]{1,0:T(1,128)}', space=vmem, size = 0x9000, scoped, tag = 'internal scratch']
  %s0 = inlined_call_operand.vmem [shape: bf16[16,32], index: 0, kind: input, shape index: {}]
  %s1 = inlined_call_operand.vmem [shape: bf16[16,32], index: 1, kind: input, shape index: {}]
  %s2 = inlined_call_operand.hbm [shape: bf16[2,8,8], index: 2, kind: input, shape index: {}]
  %s3 = inlined_call_operand.vmem [shape: bf16[32,192], index: 3, kind: input, shape index: {}]
  %s4 = inlined_call_operand.vmem [shape: f32[1,192], index: 4, kind: input, shape index: {}]
  %s5 = inlined_call_operand.vmem [shape: bf16[64,32], index: 5, kind: input, shape index: {}]
  %s6 = inlined_call_operand.vmem [shape: f32[1,32], index: 6, kind: input, shape index: {}]
  %s7 = inlined_call_operand.vmem [shape: f32[1,32], index: 7, kind: input, shape index: {}]
  %s8 = inlined_call_operand.vmem [shape: f32[1,32], index: 8, kind: input, shape index: {}]
  %s9 = inlined_call_operand.hbm [shape: f32[16,32], index: 9, kind: output, shape index: {}]
  %s10 = sld [smem:[#allocation0]]
  $region73: #{tpu_custom_call.1} parent=0
    _
  %s12 = ssub.s32 1, %s10
  %s13 = scalar_select 0, %s12, %s10
  $region1: #{tpu_custom_call.1} parent=0
    #allocation2 [shape = 'u8[4096]{0}', space=vmem, size = 0x1000, scoped, tag = 'input window, operand 2']
    #allocation3 [shape = 's32[2]{0}', space=sflag, size = 0x8, scoped, tag = 'scoped memory for tpu_custom_call.1']
    #allocation4 [shape = 's32[2]{0}', space=sflag, size = 0x8, scoped, tag = 'scoped memory for tpu_custom_call.1']
    #allocation5 [shape = 'u8[8192]{0}', space=vmem, size = 0x2000, scoped, tag = 'output window, operand 0']
    %14 = vsyncpa [#allocation3], 0
    %s15 = scalar_lea.sflag [#allocation3], 1
    %16 = vsyncpa %s15, 0
    %17 = vsyncpa [#allocation4], 0
    %s18 = scalar_lea.sflag [#allocation4], 1
    %19 = vsyncpa %s18, 0
    loop: start=0, step=1, limit=4
    $region2: #{tpu_custom_call.1} parent=1 // loop_pre_header
      _
    $region3: #{tpu_custom_call.1} parent=1 // loop_header
      %s21 = sphi 0, %s25
      %p22 = scmp.ge.s32.totalorder %s21, 4
      %s31 = sphi 0, %s33
      %s34 = sphi 0, %s31
      %s35 = sphi 0, %s34
      %s51 = sphi 0, %s35
      %s57 = sphi 0, %s59
      %s60 = sphi 0, %s57
      %s61 = sphi 0, %s60
      %s77 = sphi 0, %s61
      %s83 = sphi 0, %s85
      %s86 = sphi 0, %s83
      %s87 = sphi 0, %s86
      %s103 = sphi 0, %s87
      %s107 = sphi 0, %s107
      %s109 = sphi 0, %s107
      %s110 = sphi 0, %s109
      %s124 = sphi 0, %s110
      %s128 = sphi 0, %s128
      %s130 = sphi 0, %s128
      %s131 = sphi 0, %s130
      %s145 = sphi 0, %s131
      %s149 = sphi 0, %s149
      %s151 = sphi 0, %s149
      %s152 = sphi 0, %s151
      %s166 = sphi 0, %s152
      %s170 = sphi 0, %s170
      %s172 = sphi 0, %s170
      %s173 = sphi 0, %s172
      %s187 = sphi 0, %s173
      %s191 = sphi 0, %s191
      %s193 = sphi 0, %s191
      %s194 = sphi 0, %s193
      %s208 = sphi 0, %s194
      %s212 = sphi 0, %s212
      %s214 = sphi 0, %s212
      %s215 = sphi 0, %s214
      %s229 = sphi 0, %s215
      %s235 = sphi 0, %s237
      %s238 = sphi 0, %s235
      %s239 = sphi 0, %s238
      %s255 = sphi 0, %s239
    $region4: #{tpu_custom_call.1} parent=1 // loop_header_branch
      %24 = sbr.rel (%p22) target = $region8
    $region5: #{tpu_custom_call.1} parent=1 // loop_body
      %s26 = ssub.s32 %s21, 1
      %s27 = ssub.s32 %s21, 2
      %s28 = sadd.s32 %s21, 1
      %s29 = ssub.s32 %s21, %s28
      %p30 = scmp.eq.s32.totalorder %s29, 0
      %s32 = sadd.s32 %s31, 1
      %s33 = scalar_select %p30, %s31, %s32
      %p36 = pneg %p30
      %p37 = scmp.eq.s32.totalorder %s21, 1
      %p38 = por %p36, %p37
      %p39 = scmp.ne.s32.totalorder %s31, %s34
      %p40 = scmp.eq.s32.totalorder %s21, 0
      %p41 = por %p39, %p40
      %p42 = scmp.ne.s32.totalorder %s31, %s34
      %p43 = scmp.eq.s32.totalorder %s26, 1
      %p44 = por %p42, %p43
      %p45 = scmp.ne.s32.totalorder %s34, %s35
      %p46 = scmp.eq.s32.totalorder %s26, 0
      %p47 = por %p45, %p46
      %p48 = scmp.ne.s32.totalorder %s34, %s35
      %p49 = scmp.eq.s32.totalorder %s27, 1
      %p50 = por %p48, %p49
      %p52 = scmp.ne.s32.totalorder %s35, %s51
      %p53 = scmp.eq.s32.totalorder %s27, 0
      %p54 = por %p52, %p53
      %s55 = ssub.s32 %s21, %s28
      %p56 = scmp.eq.s32.totalorder %s55, 0
      %s58 = sadd.s32 %s57, 1
      %s59 = scalar_select %p56, %s57, %s58
      %p62 = pneg %p56
      %p63 = scmp.eq.s32.totalorder %s21, 1
      %p64 = por %p62, %p63
      %p65 = scmp.ne.s32.totalorder %s57, %s60
      %p66 = scmp.eq.s32.totalorder %s21, 0
      %p67 = por %p65, %p66
      %p68 = scmp.ne.s32.totalorder %s57, %s60
      %p69 = scmp.eq.s32.totalorder %s26, 1
      %p70 = por %p68, %p69
      %p71 = scmp.ne.s32.totalorder %s60, %s61
      %p72 = scmp.eq.s32.totalorder %s26, 0
      %p73 = por %p71, %p72
      %p74 = scmp.ne.s32.totalorder %s60, %s61
      %p75 = scmp.eq.s32.totalorder %s27, 1
      %p76 = por %p74, %p75
      %p78 = scmp.ne.s32.totalorder %s61, %s77
      %p79 = scmp.eq.s32.totalorder %s27, 0
      %p80 = por %p78, %p79
      %s81 = ssub.s32 %s21, %s28
      %p82 = scmp.eq.s32.totalorder %s81, 0
      %s84 = sadd.s32 %s83, 1
      %s85 = scalar_select %p82, %s83, %s84
      %p88 = pneg %p82
      %p89 = scmp.eq.s32.totalorder %s21, 1
      %p90 = por %p88, %p89
      %p91 = scmp.ne.s32.totalorder %s83, %s86
      %p92 = scmp.eq.s32.totalorder %s21, 0
      %p93 = por %p91, %p92
      %p94 = scmp.ne.s32.totalorder %s83, %s86
      %p95 = scmp.eq.s32.totalorder %s26, 1
      %p96 = por %p94, %p95
      %p97 = scmp.ne.s32.totalorder %s86, %s87
      %p98 = scmp.eq.s32.totalorder %s26, 0
      %p99 = por %p97, %p98
      %p100 = scmp.ne.s32.totalorder %s86, %s87
      %p101 = scmp.eq.s32.totalorder %s27, 1
      %p102 = por %p100, %p101
      %p104 = scmp.ne.s32.totalorder %s87, %s103
      %p105 = scmp.eq.s32.totalorder %s27, 0
      %p106 = por %p104, %p105
      %s108 = sadd.s32 %s107, 1
      %p111 = scmp.eq.s32.totalorder %s21, 1
      %p112 = scmp.ne.s32.totalorder %s107, %s109
      %p113 = scmp.eq.s32.totalorder %s21, 0
      %p114 = por %p112, %p113
      %p115 = scmp.ne.s32.totalorder %s107, %s109
      %p116 = scmp.eq.s32.totalorder %s26, 1
      %p117 = por %p115, %p116
      %p118 = scmp.ne.s32.totalorder %s109, %s110
      %p119 = scmp.eq.s32.totalorder %s26, 0
      %p120 = por %p118, %p119
      %p121 = scmp.ne.s32.totalorder %s109, %s110
      %p122 = scmp.eq.s32.totalorder %s27, 1
      %p123 = por %p121, %p122
      %p125 = scmp.ne.s32.totalorder %s110, %s124
      %p126 = scmp.eq.s32.totalorder %s27, 0
      %p127 = por %p125, %p126
      %s129 = sadd.s32 %s128, 1
      %p132 = scmp.eq.s32.totalorder %s21, 1
      %p133 = scmp.ne.s32.totalorder %s128, %s130
      %p134 = scmp.eq.s32.totalorder %s21, 0
      %p135 = por %p133, %p134
      %p136 = scmp.ne.s32.totalorder %s128, %s130
      %p137 = scmp.eq.s32.totalorder %s26, 1
      %p138 = por %p136, %p137
      %p139 = scmp.ne.s32.totalorder %s130, %s131
      %p140 = scmp.eq.s32.totalorder %s26, 0
      %p141 = por %p139, %p140
      %p142 = scmp.ne.s32.totalorder %s130, %s131
      %p143 = scmp.eq.s32.totalorder %s27, 1
      %p144 = por %p142, %p143
      %p146 = scmp.ne.s32.totalorder %s131, %s145
      %p147 = scmp.eq.s32.totalorder %s27, 0
      %p148 = por %p146, %p147
      %s150 = sadd.s32 %s149, 1
      %p153 = scmp.eq.s32.totalorder %s21, 1
      %p154 = scmp.ne.s32.totalorder %s149, %s151
      %p155 = scmp.eq.s32.totalorder %s21, 0
      %p156 = por %p154, %p155
      %p157 = scmp.ne.s32.totalorder %s149, %s151
      %p158 = scmp.eq.s32.totalorder %s26, 1
      %p159 = por %p157, %p158
      %p160 = scmp.ne.s32.totalorder %s151, %s152
      %p161 = scmp.eq.s32.totalorder %s26, 0
      %p162 = por %p160, %p161
      %p163 = scmp.ne.s32.totalorder %s151, %s152
      %p164 = scmp.eq.s32.totalorder %s27, 1
      %p165 = por %p163, %p164
      %p167 = scmp.ne.s32.totalorder %s152, %s166
      %p168 = scmp.eq.s32.totalorder %s27, 0
      %p169 = por %p167, %p168
      %s171 = sadd.s32 %s170, 1
      %p174 = scmp.eq.s32.totalorder %s21, 1
      %p175 = scmp.ne.s32.totalorder %s170, %s172
      %p176 = scmp.eq.s32.totalorder %s21, 0
      %p177 = por %p175, %p176
      %p178 = scmp.ne.s32.totalorder %s170, %s172
      %p179 = scmp.eq.s32.totalorder %s26, 1
      %p180 = por %p178, %p179
      %p181 = scmp.ne.s32.totalorder %s172, %s173
      %p182 = scmp.eq.s32.totalorder %s26, 0
      %p183 = por %p181, %p182
      %p184 = scmp.ne.s32.totalorder %s172, %s173
      %p185 = scmp.eq.s32.totalorder %s27, 1
      %p186 = por %p184, %p185
      %p188 = scmp.ne.s32.totalorder %s173, %s187
      %p189 = scmp.eq.s32.totalorder %s27, 0
      %p190 = por %p188, %p189
      %s192 = sadd.s32 %s191, 1
      %p195 = scmp.eq.s32.totalorder %s21, 1
      %p196 = scmp.ne.s32.totalorder %s191, %s193
      %p197 = scmp.eq.s32.totalorder %s21, 0
      %p198 = por %p196, %p197
      %p199 = scmp.ne.s32.totalorder %s191, %s193
      %p200 = scmp.eq.s32.totalorder %s26, 1
      %p201 = por %p199, %p200
      %p202 = scmp.ne.s32.totalorder %s193, %s194
      %p203 = scmp.eq.s32.totalorder %s26, 0
      %p204 = por %p202, %p203
      %p205 = scmp.ne.s32.totalorder %s193, %s194
      %p206 = scmp.eq.s32.totalorder %s27, 1
      %p207 = por %p205, %p206
      %p209 = scmp.ne.s32.totalorder %s194, %s208
      %p210 = scmp.eq.s32.totalorder %s27, 0
      %p211 = por %p209, %p210
      %s213 = sadd.s32 %s212, 1
      %p216 = scmp.eq.s32.totalorder %s21, 1
      %p217 = scmp.ne.s32.totalorder %s212, %s214
      %p218 = scmp.eq.s32.totalorder %s21, 0
      %p219 = por %p217, %p218
      %p220 = scmp.ne.s32.totalorder %s212, %s214
      %p221 = scmp.eq.s32.totalorder %s26, 1
      %p222 = por %p220, %p221
      %p223 = scmp.ne.s32.totalorder %s214, %s215
      %p224 = scmp.eq.s32.totalorder %s26, 0
      %p225 = por %p223, %p224
      %p226 = scmp.ne.s32.totalorder %s214, %s215
      %p227 = scmp.eq.s32.totalorder %s27, 1
      %p228 = por %p226, %p227
      %p230 = scmp.ne.s32.totalorder %s215, %s229
      %p231 = scmp.eq.s32.totalorder %s27, 0
      %p232 = por %p230, %p231
      %s233 = ssub.s32 %s21, %s28
      %p234 = scmp.eq.s32.totalorder %s233, 0
      %s236 = sadd.s32 %s235, 1
      %s237 = scalar_select %p234, %s235, %s236
      %p240 = pneg %p234
      %p241 = scmp.eq.s32.totalorder %s21, 1
      %p242 = por %p240, %p241
      %p243 = scmp.ne.s32.totalorder %s235, %s238
      %p244 = scmp.eq.s32.totalorder %s21, 0
      %p245 = por %p243, %p244
      %p246 = scmp.ne.s32.totalorder %s235, %s238
      %p247 = scmp.eq.s32.totalorder %s26, 1
      %p248 = por %p246, %p247
      %p249 = scmp.ne.s32.totalorder %s238, %s239
      %p250 = scmp.eq.s32.totalorder %s26, 0
      %p251 = por %p249, %p250
      %p252 = scmp.ne.s32.totalorder %s238, %s239
      %p253 = scmp.eq.s32.totalorder %s27, 1
      %p254 = por %p252, %p253
      %p256 = scmp.ne.s32.totalorder %s239, %s255
      %p257 = scmp.eq.s32.totalorder %s27, 0
      %p258 = por %p256, %p257
      %p259 = scmp.le.s32.totalorder 1, %s21
      %p260 = scmp.lt.s32.totalorder %s21, 3
      %p261 = pnand %p259, %p260
      %p262 = pneg %p261
      // Predicated region
      $region9: #{tpu_custom_call.1} parent=5 // pred_check
        _
      $region10: #{tpu_custom_call.1} parent=5 // pred_check_branch
        %264 = sbr.rel (%p261) target = $region12
      $region11: #{tpu_custom_call.1} parent=5 // pred_region
        %s265 = ssub.s32 %s21, 1
        // Predicated region
        $region13: #{tpu_custom_call.1} parent=11 // pred_check
          %p266 = pneg %p120
        $region14: #{tpu_custom_call.1} parent=11 // pred_check_branch
          %268 = sbr.rel (%p266) target = $region16
        $region15: #{tpu_custom_call.1} parent=11 // pred_region
          _
        $region16: #{tpu_custom_call.1} parent=11 // pred_fallthru
          _
        // Predicated region
        $region17: #{tpu_custom_call.1} parent=11 // pred_check
          %p269 = pneg %p141
        $region18: #{tpu_custom_call.1} parent=11 // pred_check_branch
          %271 = sbr.rel (%p269) target = $region20
        $region19: #{tpu_custom_call.1} parent=11 // pred_region
          _
        $region20: #{tpu_custom_call.1} parent=11 // pred_fallthru
          _
        // Predicated region
        $region21: #{tpu_custom_call.1} parent=11 // pred_check
          %p272 = pneg %p162
        $region22: #{tpu_custom_call.1} parent=11 // pred_check_branch
          %274 = sbr.rel (%p272) target = $region24
        $region23: #{tpu_custom_call.1} parent=11 // pred_region
          _
        $region24: #{tpu_custom_call.1} parent=11 // pred_fallthru
          _
        // Predicated region
        $region25: #{tpu_custom_call.1} parent=11 // pred_check
          %p275 = pneg %p183
        $region26: #{tpu_custom_call.1} parent=11 // pred_check_branch
          %277 = sbr.rel (%p275) target = $region28
        $region27: #{tpu_custom_call.1} parent=11 // pred_region
          _
        $region28: #{tpu_custom_call.1} parent=11 // pred_fallthru
          _
        // Predicated region
        $region29: #{tpu_custom_call.1} parent=11 // pred_check
          %p278 = pneg %p204
        $region30: #{tpu_custom_call.1} parent=11 // pred_check_branch
          %280 = sbr.rel (%p278) target = $region32
        $region31: #{tpu_custom_call.1} parent=11 // pred_region
          _
        $region32: #{tpu_custom_call.1} parent=11 // pred_fallthru
          _
        // Predicated region
        $region33: #{tpu_custom_call.1} parent=11 // pred_check
          %p281 = pneg %p225
        $region34: #{tpu_custom_call.1} parent=11 // pred_check_branch
          %283 = sbr.rel (%p281) target = $region36
        $region35: #{tpu_custom_call.1} parent=11 // pred_region
          _
        $region36: #{tpu_custom_call.1} parent=11 // pred_fallthru
          _
      $region12: #{tpu_custom_call.1} parent=5 // pred_fallthru
        _
      %p284 = scmp.lt.s32.totalorder %s21, 2
      // Predicated region
      $region37: #{tpu_custom_call.1} parent=5 // pred_check
        %p285 = pneg %p284
      $region38: #{tpu_custom_call.1} parent=5 // pred_check_branch
        %287 = sbr.rel (%p285) target = $region40
      $region39: #{tpu_custom_call.1} parent=5 // pred_region
        // Predicated region
        $region41: #{tpu_custom_call.1} parent=39 // pred_check
          %p288 = pneg %p41
        $region42: #{tpu_custom_call.1} parent=39 // pred_check_branch
          %290 = sbr.rel (%p288) target = $region44
        $region43: #{tpu_custom_call.1} parent=39 // pred_region
          %p291 = scmp.lt.s32.totalorder %s21, 1
          %s292 = scalar_select %p291, %s21, 1
          %s293 = smul.addr %s292, 4
          %s294 = scalar_lea.vmem %s0, %s293
        $region44: #{tpu_custom_call.1} parent=39 // pred_fallthru
          _
        // Predicated region
        $region45: #{tpu_custom_call.1} parent=39 // pred_check
          %p295 = pneg %p67
        $region46: #{tpu_custom_call.1} parent=39 // pred_check_branch
          %297 = sbr.rel (%p295) target = $region48
        $region47: #{tpu_custom_call.1} parent=39 // pred_region
          %p298 = scmp.lt.s32.totalorder %s21, 1
          %s299 = scalar_select %p298, %s21, 1
          %s300 = smul.addr %s299, 4
          %s301 = scalar_lea.vmem %s1, %s300
        $region48: #{tpu_custom_call.1} parent=39 // pred_fallthru
          _
        // Predicated region
        $region49: #{tpu_custom_call.1} parent=39 // pred_check
          %p302 = pneg %p93
        $region50: #{tpu_custom_call.1} parent=39 // pred_check_branch
          %304 = sbr.rel (%p302) target = $region52
        $region51: #{tpu_custom_call.1} parent=39 // pred_region
          %s305 = sand.u32 %s83, 1
          %s306 = scalar_lea.sflag [#allocation3], %s305
          %s307 = sand.u32 %s83, 1
          %s308 = smul.addr %s307, 4
          %s309 = scalar_lea.vmem [#allocation2], %s308
          %311 = vsyncadd %s306, 0
          %s312 = smul.addr %s21, 4
          %s313 = scalar_lea.hbm %s2, %s312
          %s315 = sshll.u32 %s313, 4
          %s316 = int_to_ptr.hbm [resolvable:$true] %s315
          %s317 = sshll.u32 %s309, 4
          %s318 = int_to_ptr.vmem [resolvable:$true] %s317
          %320 = dma.hbm_to_vmem [thread:$0]  %s316, 64, %s318, %s306
        $region52: #{tpu_custom_call.1} parent=39 // pred_fallthru
          _
      $region40: #{tpu_custom_call.1} parent=5 // pred_fallthru
        _
      %p321 = scmp.le.s32.totalorder 1, %s21
      %p322 = scmp.lt.s32.totalorder %s21, 3
      %p323 = pnand %p321, %p322
      %p324 = pneg %p323
      // Predicated region
      $region53: #{tpu_custom_call.1} parent=5 // pred_check
        _
      $region54: #{tpu_custom_call.1} parent=5 // pred_check_branch
        %326 = sbr.rel (%p323) target = $region56
      $region55: #{tpu_custom_call.1} parent=5 // pred_region
        %s327 = ssub.s32 %s21, 1
        %s328 = sand.u32 %s86, 1
        %s329 = scalar_lea.sflag [#allocation3], %s328
        %s330 = sand.u32 %s86, 1
        %s331 = smul.addr %s330, 4
        %s332 = scalar_lea.vmem [#allocation2], %s331
        // Predicated region
        $region57: #{tpu_custom_call.1} parent=55 // pred_check
          %p333 = pneg %p99
        $region58: #{tpu_custom_call.1} parent=55 // pred_check_branch
          %335 = sbr.rel (%p333) target = $region60
        $region59: #{tpu_custom_call.1} parent=55 // pred_region
          %337 = dma.done %s329, 64
        $region60: #{tpu_custom_call.1} parent=55 // pred_fallthru
          _
        %p338 = scmp.lt.s32.totalorder %s26, 1
        %s339 = scalar_select %p338, %s26, 1
        %s340 = smul.addr %s339, 4
        %s341 = scalar_lea.vmem %s0, %s340
        %p342 = pneg %p47
        %p343 = pneg %p44
        %p344 = scmp.lt.s32.totalorder %s26, 1
        %s345 = scalar_select %p344, %s26, 1
        %s346 = smul.addr %s345, 4
        %s347 = scalar_lea.vmem %s1, %s346
        %p348 = pneg %p73
        %p349 = pneg %p70
        %s350 = sand.u32 %s86, 1
        %s351 = scalar_lea.sflag [#allocation3], %s350
        %s352 = sand.u32 %s86, 1
        %s353 = smul.addr %s352, 4
        %s354 = scalar_lea.vmem [#allocation2], %s353
        %p355 = pneg %p99
        %p356 = pneg %p96
        %p357 = pneg %p120
        %p358 = pneg %p117
        %p359 = pneg %p141
        %p360 = pneg %p138
        %p361 = pneg %p162
        %p362 = pneg %p159
        %p363 = pneg %p183
        %p364 = pneg %p180
        %p365 = pneg %p204
        %p366 = pneg %p201
        %p367 = pneg %p225
        %p368 = pneg %p222
        %p369 = pneg %p251
        %p370 = pneg %p248
        %s371 = sand.u32 %s238, 1
        %s372 = scalar_lea.sflag [#allocation4], %s371
        %s373 = sand.u32 %s238, 1
        %s374 = smul.addr %s373, 8
        %s375 = scalar_lea.vmem [#allocation5], %s374
        %p376 = scmp.lt.s32.totalorder %s26, 1
        %s377 = scalar_select %p376, %s26, 1
        %s378 = smul.addr %s377, 4
        %s379 = scalar_lea.vmem %s0, %s378
        %p380 = scmp.lt.s32.totalorder %s26, 1
        %s381 = scalar_select %p380, %s26, 1
        %s382 = smul.addr %s381, 4
        %s383 = scalar_lea.vmem %s1, %s382
        %v385 = vld [vmem:[%s379] sm:$0xf]
        %v386 = vld [vmem:[%s3] sm:$0xff]
        %v387 = vld [vmem:[%s3 + $0x8] sm:$0xff]
        %v388 = vld [vmem:[%s3 + $0x10] sm:$0xff]
        %v389 = vld [vmem:[%s3 + $0x18] sm:$0xff]
        %v390 = vld [vmem:[%s4] sm:$0x3]
        %v391 = vld [vmem:[%s383] sm:$0xf]
        %v393 = vperm.slane %v390, 0
        %v399 = vunpack.c.l.b16 %v386
        %v400 = vunpack.c.l.b16 %v387
        %v401 = vunpack.c.l.b16 %v388
        %v402 = vunpack.c.l.b16 %v389
        %v403 = vpack.c.b16 %v400, %v399
        %v404 = vpack.c.b16 %v402, %v401
        %vm407 = vcmask 261120
        %v409 = vsel %vm407, %v385, 0
        %411 = vmatpush.bf16.msra.mxu0 0
        %412 = vmatpush.bf16.msra.mxu0 0
        %413 = vmatpush.bf16.msra.mxu0 0
        %414 = vmatpush.bf16.msra.mxu0 0
        %415 = vmatpush.bf16.msra.mxu0 0
        %416 = vmatpush.bf16.msra.mxu0 0
        %417 = vmatpush.bf16.msra.mxu0 %v404
        %418 = vmatpush.bf16.msra.mxu0 %v403
        %419 = vmatmul.bf16.gmra.mxu0 %v409
        %v420 = vpop.f32.mrf.mxu0
        %v421 = vadd.f32 %v393, %v420
        %v422 = vpop.f32.mrf.mxu0
        %423 = vdwg.mxu0
        %v424 = vperm.slane %v390, 1
        %v425 = vunpack.c.h.b16 %v386
        %v426 = vunpack.c.h.b16 %v387
        %v427 = vunpack.c.h.b16 %v388
        %v428 = vunpack.c.h.b16 %v389
        %v429 = vpack.c.b16 %v426, %v425
        %v430 = vpack.c.b16 %v428, %v427
        %431 = vrot.lane.b32.xlu0 %v403, 64
        %v432 = vpop.permute.xlu0 %431
        %433 = vrot.lane.b32.xlu0 %v429, 64
        %v434 = vpop.permute.xlu0 %433
        %435 = vrot.lane.b32.xlu0 %v404, 64
        %v436 = vpop.permute.xlu0 %435
        %437 = vrot.lane.b32.xlu0 %v430, 64
        %v438 = vpop.permute.xlu0 %437
        %vm439 = vcmask 523264
        %v440 = vsel %vm439, %v432, %v434
        %v441 = vsel %vm439, %v436, %v438
        %444 = vrot.lane.b32.xlu0 %v393, 64
        %v445 = vpop.permute.xlu0 %444
        %446 = vrot.lane.b32.xlu0 %v424, 64
        %v447 = vpop.permute.xlu0 %446
        %vm448 = vcmask 523264
        %v449 = vsel %vm448, %v445, %v447
        %v452 = vsel %vm407, %v391, 0
        %454 = vmatpush.bf16.msra.mxu0 0
        %455 = vmatpush.bf16.msra.mxu0 0
        %456 = vmatpush.bf16.msra.mxu0 0
        %457 = vmatpush.bf16.msra.mxu0 0
        %458 = vmatpush.bf16.msra.mxu0 0
        %459 = vmatpush.bf16.msra.mxu0 0
        %460 = vmatpush.bf16.msra.mxu0 %v441
        %461 = vmatpush.bf16.msra.mxu0 %v440
        %462 = vmatmul.bf16.gmra.mxu0 %v452
        %v463 = vpop.f32.mrf.mxu0
        %v464 = vadd.f32 %v449, %v463
        %v465 = vpop.f32.mrf.mxu0
        %466 = vdwg.mxu0
        %468 = vrot.lane.b32.xlu0 %v421, 112
        %v469 = vpop.permute.xlu0 %468
        %471 = vrot.lane.b32.xlu0 %v421, 96
        %v472 = vpop.permute.xlu0 %471
        %474 = vrot.lane.b32.xlu0 %v421, 80
        %v475 = vpop.permute.xlu0 %474
        %v477 = vrot.slane %v472, 4
        %vm478 = vcmask 1047556
        %v479 = vsel %vm478, %v477, %v421
        %v480 = vrot.slane %v421, 4
        %v481 = vsel %vm478, %v472, %v480
        %v483 = vunpack.c.l.s4 1983009808
        %v484 = vunpack.c.0.s8 %v483
        %v485 = vperm.slane %v479, %v484
        %v487 = vunpack.c.l.s4 1983009808
        %v488 = vunpack.c.0.s8 %v487
        %v489 = vperm.slane %v481, %v488
        %v490 = vrot.slane %v475, 4
        %v491 = vsel %vm478, %v490, %v469
        %v492 = vrot.slane %v469, 4
        %v493 = vsel %vm478, %v475, %v492
        %v495 = vunpack.c.l.s4 1983009808
        %v496 = vunpack.c.0.s8 %v495
        %v497 = vperm.slane %v491, %v496
        %v499 = vunpack.c.l.s4 1983009808
        %v500 = vunpack.c.0.s8 %v499
        %v501 = vperm.slane %v493, %v500
        %v502 = vrot.slane %v497, 4
        %v503 = vsel %vm478, %v502, %v485
        %v504 = vrot.slane %v485, 4
        %v505 = vsel %vm478, %v497, %v504
        %v507 = vunpack.c.l.s4 1934713408
        %v508 = vunpack.c.0.s8 %v507
        %v509 = vperm.slane %v503, %v508
        %v511 = vunpack.c.l.s4 1934713408
        %v512 = vunpack.c.0.s8 %v511
        %v513 = vperm.slane %v505, %v512
        %v514 = vrot.slane %v501, 4
        %v515 = vsel %vm478, %v514, %v489
        %v516 = vrot.slane %v489, 4
        %v517 = vsel %vm478, %v501, %v516
        %v519 = vunpack.c.l.s4 1934713408
        %v520 = vunpack.c.0.s8 %v519
        %v521 = vperm.slane %v515, %v520
        %v523 = vunpack.c.l.s4 1934713408
        %v524 = vunpack.c.0.s8 %v523
        %v525 = vperm.slane %v517, %v524
        %v526 = vrot.slane %v509, 4
        %v527 = vsel %vm478, 0.0, %v526
        %v528 = vrot.slane %v513, 4
        %v529 = vsel %vm478, 0.0, %v528
        %v530 = vrot.slane %v521, 4
        %v531 = vsel %vm478, 0.0, %v530
        %v532 = vrot.slane %v525, 4
        %v533 = vsel %vm478, 0.0, %v532
        %v534 = vsel %vm478, %v528, %v509
        %v536 = vunpack.c.l.s4 1983009808
        %v537 = vunpack.c.0.s8 %v536
        %v538 = vperm.slane %v534, %v537
        %v539 = vrot.slane %v529, 4
        %v540 = vsel %vm478, %v539, %v527
        %v542 = vunpack.c.l.s4 1983009808
        %v543 = vunpack.c.0.s8 %v542
        %v544 = vperm.slane %v540, %v543
        %v545 = vsel %vm478, %v532, %v521
        %v547 = vunpack.c.l.s4 1983009808
        %v548 = vunpack.c.0.s8 %v547
        %v549 = vperm.slane %v545, %v548
        %v550 = vrot.slane %v533, 4
        %v551 = vsel %vm478, %v550, %v531
        %v553 = vunpack.c.l.s4 1983009808
        %v554 = vunpack.c.0.s8 %v553
        %v555 = vperm.slane %v551, %v554
        %v556 = vrot.slane %v544, 4
        %v557 = vsel %vm478, %v556, %v538
        %v558 = vrot.slane %v538, 4
        %v559 = vsel %vm478, %v544, %v558
        %v561 = vunpack.c.l.s4 1934713408
        %v562 = vunpack.c.0.s8 %v561
        %v563 = vperm.slane %v557, %v562
        %v565 = vunpack.c.l.s4 1934713408
        %v566 = vunpack.c.0.s8 %v565
        %v567 = vperm.slane %v559, %v566
        %v568 = vrot.slane %v555, 4
        %v569 = vsel %vm478, %v568, %v549
        %v570 = vrot.slane %v549, 4
        %v571 = vsel %vm478, %v555, %v570
        %v573 = vunpack.c.l.s4 1934713408
        %v574 = vunpack.c.0.s8 %v573
        %v575 = vperm.slane %v569, %v574
        %v577 = vunpack.c.l.s4 1934713408
        %v578 = vunpack.c.0.s8 %v577
        %v579 = vperm.slane %v571, %v578
        %v580 = vrot.slane %v575, 4
        %v581 = vsel %vm478, %v580, %v563
        %v582 = vrot.slane %v563, 4
        %v583 = vsel %vm478, %v575, %v582
        %v584 = vrot.slane %v579, 4
        %v585 = vsel %vm478, %v584, %v567
        %v586 = vrot.slane %v567, 4
        %v587 = vsel %vm478, %v579, %v586
        %589 = vrot.lane.b32.xlu0 %v464, 112
        %v590 = vpop.permute.xlu0 %589
        %592 = vrot.lane.b32.xlu0 %v464, 96
        %v593 = vpop.permute.xlu0 %592
        %595 = vrot.lane.b32.xlu0 %v464, 80
        %v596 = vpop.permute.xlu0 %595
        %v598 = vrot.slane %v593, 4
        %v599 = vsel %vm478, %v598, %v464
        %v600 = vrot.slane %v464, 4
        %v601 = vsel %vm478, %v593, %v600
        %v603 = vunpack.c.l.s4 1983009808
        %v604 = vunpack.c.0.s8 %v603
        %v605 = vperm.slane %v599, %v604
        %v607 = vunpack.c.l.s4 1983009808
        %v608 = vunpack.c.0.s8 %v607
        %v609 = vperm.slane %v601, %v608
        %v610 = vrot.slane %v596, 4
        %v611 = vsel %vm478, %v610, %v590
        %v612 = vrot.slane %v590, 4
        %v613 = vsel %vm478, %v596, %v612
        %v615 = vunpack.c.l.s4 1983009808
        %v616 = vunpack.c.0.s8 %v615
        %v617 = vperm.slane %v611, %v616
        %v619 = vunpack.c.l.s4 1983009808
        %v620 = vunpack.c.0.s8 %v619
        %v621 = vperm.slane %v613, %v620
        %v622 = vrot.slane %v617, 4
        %v623 = vsel %vm478, %v622, %v605
        %v624 = vrot.slane %v605, 4
        %v625 = vsel %vm478, %v617, %v624
        %v627 = vunpack.c.l.s4 1934713408
        %v628 = vunpack.c.0.s8 %v627
        %v629 = vperm.slane %v623, %v628
        %v631 = vunpack.c.l.s4 1934713408
        %v632 = vunpack.c.0.s8 %v631
        %v633 = vperm.slane %v625, %v632
        %v634 = vrot.slane %v621, 4
        %v635 = vsel %vm478, %v634, %v609
        %v636 = vrot.slane %v609, 4
        %v637 = vsel %vm478, %v621, %v636
        %v639 = vunpack.c.l.s4 1934713408
        %v640 = vunpack.c.0.s8 %v639
        %v641 = vperm.slane %v635, %v640
        %v643 = vunpack.c.l.s4 1934713408
        %v644 = vunpack.c.0.s8 %v643
        %v645 = vperm.slane %v637, %v644
        %v646 = vrot.slane %v629, 4
        %v647 = vsel %vm478, 0.0, %v646
        %v648 = vrot.slane %v633, 4
        %v649 = vsel %vm478, 0.0, %v648
        %v650 = vrot.slane %v641, 4
        %v651 = vsel %vm478, 0.0, %v650
        %v652 = vrot.slane %v645, 4
        %v653 = vsel %vm478, 0.0, %v652
        %v654 = vsel %vm478, %v648, %v629
        %v656 = vunpack.c.l.s4 1983009808
        %v657 = vunpack.c.0.s8 %v656
        %v658 = vperm.slane %v654, %v657
        %v659 = vrot.slane %v649, 4
        %v660 = vsel %vm478, %v659, %v647
        %v662 = vunpack.c.l.s4 1983009808
        %v663 = vunpack.c.0.s8 %v662
        %v664 = vperm.slane %v660, %v663
        %v665 = vsel %vm478, %v652, %v641
        %v667 = vunpack.c.l.s4 1983009808
        %v668 = vunpack.c.0.s8 %v667
        %v669 = vperm.slane %v665, %v668
        %v670 = vrot.slane %v653, 4
        %v671 = vsel %vm478, %v670, %v651
        %v673 = vunpack.c.l.s4 1983009808
        %v674 = vunpack.c.0.s8 %v673
        %v675 = vperm.slane %v671, %v674
        %v676 = vrot.slane %v664, 4
        %v677 = vsel %vm478, %v676, %v658
        %v678 = vrot.slane %v658, 4
        %v679 = vsel %vm478, %v664, %v678
        %v681 = vunpack.c.l.s4 1934713408
        %v682 = vunpack.c.0.s8 %v681
        %v683 = vperm.slane %v677, %v682
        %v685 = vunpack.c.l.s4 1934713408
        %v686 = vunpack.c.0.s8 %v685
        %v687 = vperm.slane %v679, %v686
        %v688 = vrot.slane %v675, 4
        %v689 = vsel %vm478, %v688, %v669
        %v690 = vrot.slane %v669, 4
        %v691 = vsel %vm478, %v675, %v690
        %v693 = vunpack.c.l.s4 1934713408
        %v694 = vunpack.c.0.s8 %v693
        %v695 = vperm.slane %v689, %v694
        %v697 = vunpack.c.l.s4 1934713408
        %v698 = vunpack.c.0.s8 %v697
        %v699 = vperm.slane %v691, %v698
        %v700 = vrot.slane %v695, 4
        %v701 = vsel %vm478, %v700, %v683
        %v702 = vrot.slane %v683, 4
        %v703 = vsel %vm478, %v695, %v702
        %v704 = vrot.slane %v699, 4
        %v705 = vsel %vm478, %v704, %v687
        %v706 = vrot.slane %v687, 4
        %v707 = vsel %vm478, %v699, %v706
        %708 = vrot.lane.b32.xlu0 %v464, 64
        %v709 = vpop.permute.xlu0 %708
        %710 = vrot.lane.b32.xlu0 %v590, 64
        %v711 = vpop.permute.xlu0 %710
        %712 = vrot.lane.b32.xlu0 %v593, 64
        %v713 = vpop.permute.xlu0 %712
        %714 = vrot.lane.b32.xlu0 %v596, 64
        %v715 = vpop.permute.xlu0 %714
        %v720 = vrot.slane %v713, 4
        %v721 = vsel %vm478, %v720, %v709
        %v722 = vrot.slane %v709, 4
        %v723 = vsel %vm478, %v713, %v722
        %v725 = vunpack.c.l.s4 1983009808
        %v726 = vunpack.c.0.s8 %v725
        %v727 = vperm.slane %v721, %v726
        %v729 = vunpack.c.l.s4 1983009808
        %v730 = vunpack.c.0.s8 %v729
        %v731 = vperm.slane %v723, %v730
        %v732 = vrot.slane %v715, 4
        %v733 = vsel %vm478, %v732, %v711
        %v734 = vrot.slane %v711, 4
        %v735 = vsel %vm478, %v715, %v734
        %v737 = vunpack.c.l.s4 1983009808
        %v738 = vunpack.c.0.s8 %v737
        %v739 = vperm.slane %v733, %v738
        %v741 = vunpack.c.l.s4 1983009808
        %v742 = vunpack.c.0.s8 %v741
        %v743 = vperm.slane %v735, %v742
        %v744 = vrot.slane %v739, 4
        %v745 = vsel %vm478, %v744, %v727
        %v746 = vrot.slane %v727, 4
        %v747 = vsel %vm478, %v739, %v746
        %v749 = vunpack.c.l.s4 1934713408
        %v750 = vunpack.c.0.s8 %v749
        %v751 = vperm.slane %v745, %v750
        %v753 = vunpack.c.l.s4 1934713408
        %v754 = vunpack.c.0.s8 %v753
        %v755 = vperm.slane %v747, %v754
        %v756 = vrot.slane %v743, 4
        %v757 = vsel %vm478, %v756, %v731
        %v758 = vrot.slane %v731, 4
        %v759 = vsel %vm478, %v743, %v758
        %v761 = vunpack.c.l.s4 1934713408
        %v762 = vunpack.c.0.s8 %v761
        %v763 = vperm.slane %v757, %v762
        %v765 = vunpack.c.l.s4 1934713408
        %v766 = vunpack.c.0.s8 %v765
        %v767 = vperm.slane %v759, %v766
        %v768 = vrot.slane %v751, 4
        %v769 = vsel %vm478, 0.0, %v768
        %v770 = vrot.slane %v755, 4
        %v771 = vsel %vm478, 0.0, %v770
        %v772 = vrot.slane %v763, 4
        %v773 = vsel %vm478, 0.0, %v772
        %v774 = vrot.slane %v767, 4
        %v775 = vsel %vm478, 0.0, %v774
        %v776 = vsel %vm478, %v770, %v751
        %v778 = vunpack.c.l.s4 1983009808
        %v779 = vunpack.c.0.s8 %v778
        %v780 = vperm.slane %v776, %v779
        %v781 = vrot.slane %v771, 4
        %v782 = vsel %vm478, %v781, %v769
        %v784 = vunpack.c.l.s4 1983009808
        %v785 = vunpack.c.0.s8 %v784
        %v786 = vperm.slane %v782, %v785
        %v787 = vsel %vm478, %v774, %v763
        %v789 = vunpack.c.l.s4 1983009808
        %v790 = vunpack.c.0.s8 %v789
        %v791 = vperm.slane %v787, %v790
        %v792 = vrot.slane %v775, 4
        %v793 = vsel %vm478, %v792, %v773
        %v795 = vunpack.c.l.s4 1983009808
        %v796 = vunpack.c.0.s8 %v795
        %v797 = vperm.slane %v793, %v796
        %v798 = vrot.slane %v786, 4
        %v799 = vsel %vm478, %v798, %v780
        %v800 = vrot.slane %v780, 4
        %v801 = vsel %vm478, %v786, %v800
        %v803 = vunpack.c.l.s4 1934713408
        %v804 = vunpack.c.0.s8 %v803
        %v805 = vperm.slane %v799, %v804
        %v807 = vunpack.c.l.s4 1934713408
        %v808 = vunpack.c.0.s8 %v807
        %v809 = vperm.slane %v801, %v808
        %v810 = vrot.slane %v797, 4
        %v811 = vsel %vm478, %v810, %v791
        %v812 = vrot.slane %v791, 4
        %v813 = vsel %vm478, %v797, %v812
        %v815 = vunpack.c.l.s4 1934713408
        %v816 = vunpack.c.0.s8 %v815
        %v817 = vperm.slane %v811, %v816
        %v819 = vunpack.c.l.s4 1934713408
        %v820 = vunpack.c.0.s8 %v819
        %v821 = vperm.slane %v813, %v820
        %v822 = vrot.slane %v817, 4
        %v823 = vsel %vm478, %v822, %v805
        %v824 = vrot.slane %v805, 4
        %v825 = vsel %vm478, %v817, %v824
        %v826 = vrot.slane %v821, 4
        %v827 = vsel %vm478, %v826, %v809
        %v828 = vrot.slane %v809, 4
        %v829 = vsel %vm478, %v821, %v828
        %v830 = vpack.c.bf16 %v581, %v581
        %v831 = vpack.c.bf16 %v583, %v583
        %v832 = vpack.c.bf16 %v585, %v585
        %v833 = vpack.c.bf16 %v587, %v587
        %v834 = vpack.c.bf16 %v701, %v701
        %v835 = vpack.c.bf16 %v703, %v703
        %v836 = vpack.c.bf16 %v705, %v705
        %v837 = vpack.c.bf16 %v707, %v707
        %v838 = vpack.c.bf16 %v823, %v823
        %v839 = vpack.c.bf16 %v825, %v825
        %v840 = vpack.c.bf16 %v827, %v827
        %v841 = vpack.c.bf16 %v829, %v829
        %vm842 = vcmask 130048
        %v844 = vsel %vm842, %v830, 0
        %v847 = vsel %vm842, %v834, 0
        %849 = vmatpush.bf16.xpose.msra.mxu0 0
        %850 = vmatpush.bf16.xpose.msra.mxu0 0
        %851 = vmatpush.bf16.xpose.msra.mxu0 0
        %852 = vmatpush.bf16.xpose.msra.mxu0 0
        %853 = vmatpush.bf16.xpose.msra.mxu0 0
        %854 = vmatpush.bf16.xpose.msra.mxu0 0
        %855 = vmatpush.bf16.xpose.msra.mxu0 0
        %856 = vmatpush.bf16.xpose.msra.mxu0 %v847
        %857 = vmatmul.bf16.gmra.mxu0 %v844
        %v858 = vpop.f32.mrf.mxu0
        %v859 = vadd.f32 0.0, %v858
        %v860 = vpop.f32.mrf.mxu0
        %861 = vdwg.mxu0
        %v863 = vsel %vm842, %v831, 0
        %v866 = vsel %vm842, %v835, 0
        %868 = vmatpush.bf16.xpose.msra.mxu0 0
        %869 = vmatpush.bf16.xpose.msra.mxu0 0
        %870 = vmatpush.bf16.xpose.msra.mxu0 0
        %871 = vmatpush.bf16.xpose.msra.mxu0 0
        %872 = vmatpush.bf16.xpose.msra.mxu0 0
        %873 = vmatpush.bf16.xpose.msra.mxu0 0
        %874 = vmatpush.bf16.xpose.msra.mxu0 0
        %875 = vmatpush.bf16.xpose.msra.mxu0 %v866
        %876 = vmatmul.bf16.gmra.mxu0 %v863
        %v877 = vpop.f32.mrf.mxu0
        %v878 = vadd.f32 0.0, %v877
        %v879 = vpop.f32.mrf.mxu0
        %880 = vdwg.mxu0
        %v882 = vsel %vm842, %v832, 0
        %v885 = vsel %vm842, %v836, 0
        %887 = vmatpush.bf16.xpose.msra.mxu0 0
        %888 = vmatpush.bf16.xpose.msra.mxu0 0
        %889 = vmatpush.bf16.xpose.msra.mxu0 0
        %890 = vmatpush.bf16.xpose.msra.mxu0 0
        %891 = vmatpush.bf16.xpose.msra.mxu0 0
        %892 = vmatpush.bf16.xpose.msra.mxu0 0
        %893 = vmatpush.bf16.xpose.msra.mxu0 0
        %894 = vmatpush.bf16.xpose.msra.mxu0 %v885
        %895 = vmatmul.bf16.gmra.mxu0 %v882
        %v896 = vpop.f32.mrf.mxu0
        %v897 = vadd.f32 0.0, %v896
        %v898 = vpop.f32.mrf.mxu0
        %899 = vdwg.mxu0
        %v901 = vsel %vm842, %v833, 0
        %v904 = vsel %vm842, %v837, 0
        %906 = vmatpush.bf16.xpose.msra.mxu0 0
        %907 = vmatpush.bf16.xpose.msra.mxu0 0
        %908 = vmatpush.bf16.xpose.msra.mxu0 0
        %909 = vmatpush.bf16.xpose.msra.mxu0 0
        %910 = vmatpush.bf16.xpose.msra.mxu0 0
        %911 = vmatpush.bf16.xpose.msra.mxu0 0
        %912 = vmatpush.bf16.xpose.msra.mxu0 0
        %913 = vmatpush.bf16.xpose.msra.mxu0 %v904
        %914 = vmatmul.bf16.gmra.mxu0 %v901
        %v915 = vpop.f32.mrf.mxu0
        %v916 = vadd.f32 0.0, %v915
        %v917 = vpop.f32.mrf.mxu0
        %918 = vdwg.mxu0
        %v919 = vld [vmem:[%s332] sm:$0xf]
        %v920 = vunpack.c.l.bf16 %v919
        %v921 = vadd.f32 %v859, %v920
        %v922 = vadd.f32 %v878, %v920
        %v923 = vadd.f32 %v897, %v920
        %v924 = vadd.f32 %v916, %v920
        %vm925 = vcmask 64512
        %v926 = vsel %vm925, %v921, -inf
        %927 = vmax.xlane.f32.xlu0 %v926
        %v928 = vpop.xlane.xlu0 %927
        %v929 = vsel %vm925, %v922, -inf
        %930 = vmax.xlane.f32.xlu0 %v929
        %v931 = vpop.xlane.xlu0 %930
        %v932 = vsel %vm925, %v923, -inf
        %933 = vmax.xlane.f32.xlu0 %v932
        %v934 = vpop.xlane.xlu0 %933
        %v935 = vsel %vm925, %v924, -inf
        %936 = vmax.xlane.f32.xlu0 %v935
        %v937 = vpop.xlane.xlu0 %936
        %v938 = vsub.f32 %v921, %v928
        %v939 = vsub.f32 %v922, %v931
        %v940 = vsub.f32 %v923, %v934
        %v941 = vsub.f32 %v924, %v937
        %v942 = vmul.f32 %v938, 1.442695
        %v943 = vpow.pop %v942
        %v944 = vmul.f32 %v939, 1.442695
        %v945 = vpow.pop %v944
        %v946 = vmul.f32 %v940, 1.442695
        %v947 = vpow.pop %v946
        %v948 = vmul.f32 %v941, 1.442695
        %v949 = vpow.pop %v948
        %v950 = vsel %vm925, %v943, 0.0
        %951 = vadd.xlane.f32.xlu0 %v950
        %v952 = vpop.xlane.xlu0 %951
        %v953 = vsel %vm925, %v945, 0.0
        %954 = vadd.xlane.f32.xlu0 %v953
        %v955 = vpop.xlane.xlu0 %954
        %v956 = vsel %vm925, %v947, 0.0
        %957 = vadd.xlane.f32.xlu0 %v956
        %v958 = vpop.xlane.xlu0 %957
        %v959 = vsel %vm925, %v949, 0.0
        %960 = vadd.xlane.f32.xlu0 %v959
        %v961 = vpop.xlane.xlu0 %960
        %v962 = vrcp.pop %v952
        %v963 = vrcp.pop %v955
        %v964 = vrcp.pop %v958
        %v965 = vrcp.pop %v961
        %v966 = vmul.f32 %v943, %v962
        %v967 = vmul.f32 %v945, %v963
        %v968 = vmul.f32 %v947, %v964
        %v969 = vmul.f32 %v949, %v965
        %v970 = vpack.c.bf16 %v966, %v966
        %v971 = vpack.c.bf16 %v967, %v967
        %v972 = vpack.c.bf16 %v968, %v968
        %v973 = vpack.c.bf16 %v969, %v969
        %v975 = vsel %vm925, %v970, 0
        %vm977 = vcmask 1043456
        %v979 = vsel %vm977, %v838, 0
        %981 = vmatpush.bf16.msra.mxu0 0
        %982 = vmatpush.bf16.msra.mxu0 0
        %983 = vmatpush.bf16.msra.mxu0 0
        %984 = vmatpush.bf16.msra.mxu0 0
        %985 = vmatpush.bf16.msra.mxu0 0
        %986 = vmatpush.bf16.msra.mxu0 0
        %987 = vmatpush.bf16.msra.mxu0 0
        %988 = vmatpush.bf16.msra.mxu0 %v979
        %989 = vmatmul.bf16.gmra.mxu0 %v975
        %v990 = vpop.f32.mrf.mxu0
        %v991 = vadd.f32 0.0, %v990
        %v992 = vpop.f32.mrf.mxu0
        %993 = vdwg.mxu0
        %v995 = vsel %vm925, %v971, 0
        %v998 = vsel %vm977, %v839, 0
        %1000 = vmatpush.bf16.msra.mxu0 0
        %1001 = vmatpush.bf16.msra.mxu0 0
        %1002 = vmatpush.bf16.msra.mxu0 0
        %1003 = vmatpush.bf16.msra.mxu0 0
        %1004 = vmatpush.bf16.msra.mxu0 0
        %1005 = vmatpush.bf16.msra.mxu0 0
        %1006 = vmatpush.bf16.msra.mxu0 0
        %1007 = vmatpush.bf16.msra.mxu0 %v998
        %1008 = vmatmul.bf16.gmra.mxu0 %v995
        %v1009 = vpop.f32.mrf.mxu0
        %v1010 = vadd.f32 0.0, %v1009
        %v1011 = vpop.f32.mrf.mxu0
        %1012 = vdwg.mxu0
        %v1014 = vsel %vm925, %v972, 0
        %v1017 = vsel %vm977, %v840, 0
        %1019 = vmatpush.bf16.msra.mxu0 0
        %1020 = vmatpush.bf16.msra.mxu0 0
        %1021 = vmatpush.bf16.msra.mxu0 0
        %1022 = vmatpush.bf16.msra.mxu0 0
        %1023 = vmatpush.bf16.msra.mxu0 0
        %1024 = vmatpush.bf16.msra.mxu0 0
        %1025 = vmatpush.bf16.msra.mxu0 0
        %1026 = vmatpush.bf16.msra.mxu0 %v1017
        %1027 = vmatmul.bf16.gmra.mxu0 %v1014
        %v1028 = vpop.f32.mrf.mxu0
        %v1029 = vadd.f32 0.0, %v1028
        %v1030 = vpop.f32.mrf.mxu0
        %1031 = vdwg.mxu0
        %v1033 = vsel %vm925, %v973, 0
        %v1036 = vsel %vm977, %v841, 0
        %1038 = vmatpush.bf16.msra.mxu0 0
        %1039 = vmatpush.bf16.msra.mxu0 0
        %1040 = vmatpush.bf16.msra.mxu0 0
        %1041 = vmatpush.bf16.msra.mxu0 0
        %1042 = vmatpush.bf16.msra.mxu0 0
        %1043 = vmatpush.bf16.msra.mxu0 0
        %1044 = vmatpush.bf16.msra.mxu0 0
        %1045 = vmatpush.bf16.msra.mxu0 %v1036
        %1046 = vmatmul.bf16.gmra.mxu0 %v1033
        %v1047 = vpop.f32.mrf.mxu0
        %v1048 = vadd.f32 0.0, %v1047
        %v1049 = vpop.f32.mrf.mxu0
        %1050 = vdwg.mxu0
        %v1051 = vrot.slane %v1029, 4
        %v1052 = vsel %vm478, %v1051, %v991
        %v1053 = vrot.slane %v991, 4
        %v1054 = vsel %vm478, %v1029, %v1053
        %v1056 = vunpack.c.l.s4 1983009808
        %v1057 = vunpack.c.0.s8 %v1056
        %v1058 = vperm.slane %v1052, %v1057
        %v1060 = vunpack.c.l.s4 1983009808
        %v1061 = vunpack.c.0.s8 %v1060
        %v1062 = vperm.slane %v1054, %v1061
        %v1063 = vrot.slane %v1048, 4
        %v1064 = vsel %vm478, %v1063, %v1010
        %v1065 = vrot.slane %v1010, 4
        %v1066 = vsel %vm478, %v1048, %v1065
        %v1068 = vunpack.c.l.s4 1983009808
        %v1069 = vunpack.c.0.s8 %v1068
        %v1070 = vperm.slane %v1064, %v1069
        %v1072 = vunpack.c.l.s4 1983009808
        %v1073 = vunpack.c.0.s8 %v1072
        %v1074 = vperm.slane %v1066, %v1073
        %v1075 = vrot.slane %v1070, 4
        %v1076 = vsel %vm478, %v1075, %v1058
        %v1077 = vrot.slane %v1058, 4
        %v1078 = vsel %vm478, %v1070, %v1077
        %v1080 = vunpack.c.l.s4 1934713408
        %v1081 = vunpack.c.0.s8 %v1080
        %v1082 = vperm.slane %v1076, %v1081
        %v1084 = vunpack.c.l.s4 1934713408
        %v1085 = vunpack.c.0.s8 %v1084
        %v1086 = vperm.slane %v1078, %v1085
        %v1087 = vrot.slane %v1074, 4
        %v1088 = vsel %vm478, %v1087, %v1062
        %v1089 = vrot.slane %v1062, 4
        %v1090 = vsel %vm478, %v1074, %v1089
        %v1092 = vunpack.c.l.s4 1934713408
        %v1093 = vunpack.c.0.s8 %v1092
        %v1094 = vperm.slane %v1088, %v1093
        %v1096 = vunpack.c.l.s4 1934713408
        %v1097 = vunpack.c.0.s8 %v1096
        %v1098 = vperm.slane %v1090, %v1097
        %v1099 = vrot.slane %v1082, 4
        %v1100 = vsel %vm478, 0.0, %v1099
        %v1101 = vrot.slane %v1086, 4
        %v1102 = vsel %vm478, 0.0, %v1101
        %v1103 = vrot.slane %v1094, 4
        %v1104 = vsel %vm478, 0.0, %v1103
        %v1105 = vrot.slane %v1098, 4
        %v1106 = vsel %vm478, 0.0, %v1105
        %v1107 = vsel %vm478, %v1101, %v1082
        %v1109 = vunpack.c.l.s4 1983009808
        %v1110 = vunpack.c.0.s8 %v1109
        %v1111 = vperm.slane %v1107, %v1110
        %v1112 = vrot.slane %v1102, 4
        %v1113 = vsel %vm478, %v1112, %v1100
        %v1115 = vunpack.c.l.s4 1983009808
        %v1116 = vunpack.c.0.s8 %v1115
        %v1117 = vperm.slane %v1113, %v1116
        %v1118 = vsel %vm478, %v1105, %v1094
        %v1120 = vunpack.c.l.s4 1983009808
        %v1121 = vunpack.c.0.s8 %v1120
        %v1122 = vperm.slane %v1118, %v1121
        %v1123 = vrot.slane %v1106, 4
        %v1124 = vsel %vm478, %v1123, %v1104
        %v1126 = vunpack.c.l.s4 1983009808
        %v1127 = vunpack.c.0.s8 %v1126
        %v1128 = vperm.slane %v1124, %v1127
        %v1129 = vrot.slane %v1117, 4
        %v1130 = vsel %vm478, %v1129, %v1111
        %v1131 = vrot.slane %v1111, 4
        %v1132 = vsel %vm478, %v1117, %v1131
        %v1134 = vunpack.c.l.s4 1934713408
        %v1135 = vunpack.c.0.s8 %v1134
        %v1136 = vperm.slane %v1130, %v1135
        %v1138 = vunpack.c.l.s4 1934713408
        %v1139 = vunpack.c.0.s8 %v1138
        %v1140 = vperm.slane %v1132, %v1139
        %v1141 = vrot.slane %v1128, 4
        %v1142 = vsel %vm478, %v1141, %v1122
        %v1143 = vrot.slane %v1122, 4
        %v1144 = vsel %vm478, %v1128, %v1143
        %v1146 = vunpack.c.l.s4 1934713408
        %v1147 = vunpack.c.0.s8 %v1146
        %v1148 = vperm.slane %v1142, %v1147
        %v1150 = vunpack.c.l.s4 1934713408
        %v1151 = vunpack.c.0.s8 %v1150
        %v1152 = vperm.slane %v1144, %v1151
        %v1153 = vrot.slane %v1148, 4
        %v1154 = vsel %vm478, %v1153, %v1136
        %v1155 = vrot.slane %v1136, 4
        %v1156 = vsel %vm478, %v1148, %v1155
        %v1157 = vrot.slane %v1152, 4
        %v1158 = vsel %vm478, %v1157, %v1140
        %v1159 = vrot.slane %v1140, 4
        %v1160 = vsel %vm478, %v1152, %v1159
        %1162 = vrot.lane.b32.xlu0 %v1156, 16
        %v1163 = vpop.permute.xlu0 %1162
        %1166 = vrot.lane.b32.xlu0 %v1158, 32
        %v1167 = vpop.permute.xlu0 %1166
        %1170 = vrot.lane.b32.xlu0 %v1160, 48
        %v1171 = vpop.permute.xlu0 %1170
        %v1173 = vsel %vm842, %v1154, %v1163
        %v1174 = vsel %vm407, %v1173, %v1167
        %vm1175 = vcmask 392192
        %v1176 = vsel %vm1175, %v1174, %v1171
        %v1177 = vpack.c.bf16 %v1176, %v1176
        %v1178 = vld [vmem:[%s5] sm:$0xf]
        %v1179 = vld [vmem:[%s5 + $0x4] sm:$0xf]
        %v1180 = vld [vmem:[%s5 + $0x8] sm:$0xf]
        %v1181 = vld [vmem:[%s5 + $0xc] sm:$0xf]
        %v1182 = vld [vmem:[%s5 + $0x10] sm:$0xf]
        %v1183 = vld [vmem:[%s5 + $0x14] sm:$0xf]
        %v1184 = vld [vmem:[%s5 + $0x18] sm:$0xf]
        %v1185 = vld [vmem:[%s5 + $0x1c] sm:$0xf]
        %v1186 = vld [vmem:[%s6] sm:$0x1]
        %v1188 = vperm.slane %v1186, 0
        %v1198 = vunpack.c.l.b16 %v1178
        %v1199 = vunpack.c.l.b16 %v1179
        %v1200 = vunpack.c.l.b16 %v1180
        %v1201 = vunpack.c.l.b16 %v1181
        %v1202 = vunpack.c.l.b16 %v1182
        %v1203 = vunpack.c.l.b16 %v1183
        %v1204 = vunpack.c.l.b16 %v1184
        %v1205 = vunpack.c.l.b16 %v1185
        %v1206 = vpack.c.b16 %v1199, %v1198
        %v1207 = vpack.c.b16 %v1201, %v1200
        %v1208 = vpack.c.b16 %v1203, %v1202
        %v1209 = vpack.c.b16 %v1205, %v1204
        %v1215 = vsel %vm448, %v1177, 0
        %1217 = vmatpush.bf16.msra.mxu0 0
        %1218 = vmatpush.bf16.msra.mxu0 0
        %1219 = vmatpush.bf16.msra.mxu0 0
        %1220 = vmatpush.bf16.msra.mxu0 0
        %1221 = vmatpush.bf16.msra.mxu0 %v1209
        %1222 = vmatpush.bf16.msra.mxu0 %v1208
        %1223 = vmatpush.bf16.msra.mxu0 %v1207
        %1224 = vmatpush.bf16.msra.mxu0 %v1206
        %1225 = vmatmul.bf16.gmra.mxu0 %v1215
        %v1226 = vpop.f32.mrf.mxu0
        %v1227 = vadd.f32 %v1188, %v1226
        %v1228 = vpop.f32.mrf.mxu0
        %1229 = vdwg.mxu0
        %v1230 = vunpack.c.l.bf16 %v385
        %v1231 = vadd.f32 %v1227, %v1230
        %v1232 = vsel %vm407, %v1231, 0.0
        %1233 = vadd.xlane.f32.xlu0 %v1232
        %v1234 = vpop.xlane.xlu0 %1233
        %v1235 = vrcp.pop 32.0
        %v1236 = vmul.f32 32.0, %v1235
        %v1237 = vsub.f32 1.0, %v1236
        %v1238 = vmul.f32 %v1235, %v1237
        %v1239 = vadd.f32 %v1235, %v1238
        %vm1240 = vweird.f32 %v1235
        %v1241 = vsel %vm1240, %v1235, %v1239
        %v1242 = vmul.f32 %v1234, %v1241
        %v1243 = vsub.f32 %v1231, %v1242
        %v1244 = vmul.f32 %v1243, %v1243
        %v1245 = vsel %vm407, %v1244, 0.0
        %1246 = vadd.xlane.f32.xlu0 %v1245
        %v1247 = vpop.xlane.xlu0 %1246
        %v1248 = vmul.f32 %v1247, %v1241
        %v1249 = vadd.f32 %v1248, 1e-05
        %v1250 = vrsqrt.pop %v1249
        %v1251 = vmul.f32 %v1250, %v1249
        %v1252 = vmul.f32 %v1251, %v1250
        %v1253 = vmul.f32 0.5, %v1252
        %v1254 = vsub.f32 1.5, %v1253
        %v1255 = vmul.f32 %v1250, %v1254
        %vm1256 = vweird.f32 %v1249
        %vm1257 = vweird.f32 %v1250
        %vm1258 = vmor %vm1256, %vm1257
        %v1259 = vsel %vm1258, %v1250, %v1255
        %v1260 = vmul.f32 %v1243, %v1259
        %v1261 = vld [vmem:[%s7] sm:$0x1]
        %v1263 = vperm.slane %v1261, 0
        %v1265 = vmul.f32 %v1260, %v1263
        %v1266 = vld [vmem:[%s8] sm:$0x1]
        %v1268 = vperm.slane %v1266, 0
        %v1270 = vadd.f32 %v1265, %v1268
        %1271 = vst.msk [vmem:[%s375] sm:$0xff] %vm407, %v1270
        %s1272 = sand.u32 %s238, 1
        %s1273 = scalar_lea.sflag [#allocation4], %s1272
        %s1274 = sand.u32 %s238, 1
        %s1275 = smul.addr %s1274, 8
        %s1276 = scalar_lea.vmem [#allocation5], %s1275
        // Predicated region
        $region61: #{tpu_custom_call.1} parent=55 // pred_check
          %p1277 = pneg %p248
        $region62: #{tpu_custom_call.1} parent=55 // pred_check_branch
          %1279 = sbr.rel (%p1277) target = $region64
        $region63: #{tpu_custom_call.1} parent=55 // pred_region
          %1281 = vsyncadd %s1273, 0
          %s1282 = smul.addr %s26, 8
          %s1283 = scalar_lea.hbm %s9, %s1282
          %s1285 = sshll.u32 %s1276, 4
          %s1286 = int_to_ptr.vmem [resolvable:$true] %s1285
          %s1287 = sshll.u32 %s1283, 4
          %s1288 = int_to_ptr.hbm [resolvable:$true] %s1287
          %1290 = dma.vmem_to_hbm [thread:$0]  %s1286, 128, %s1288, %s1273
        $region64: #{tpu_custom_call.1} parent=55 // pred_fallthru
          _
      $region56: #{tpu_custom_call.1} parent=5 // pred_fallthru
        _
      %p1291 = scmp.le.s32.totalorder 2, %s21
      // Predicated region
      $region65: #{tpu_custom_call.1} parent=5 // pred_check
        %p1292 = pneg %p1291
      $region66: #{tpu_custom_call.1} parent=5 // pred_check_branch
        %1294 = sbr.rel (%p1292) target = $region68
      $region67: #{tpu_custom_call.1} parent=5 // pred_region
        %s1295 = ssub.s32 %s21, 2
        // Predicated region
        $region69: #{tpu_custom_call.1} parent=67 // pred_check
          %p1296 = pneg %p254
        $region70: #{tpu_custom_call.1} parent=67 // pred_check_branch
          %1298 = sbr.rel (%p1296) target = $region72
        $region71: #{tpu_custom_call.1} parent=67 // pred_region
          %s1299 = sand.u32 %s239, 1
          %s1300 = scalar_lea.sflag [#allocation4], %s1299
          %s1301 = sand.u32 %s239, 1
          %s1302 = smul.addr %s1301, 8
          %s1303 = scalar_lea.vmem [#allocation5], %s1302
          %1305 = dma.done %s1300, 128
        $region72: #{tpu_custom_call.1} parent=67 // pred_fallthru
          _
      $region68: #{tpu_custom_call.1} parent=5 // pred_fallthru
        _
    $region6: #{tpu_custom_call.1} parent=1 // loop_footer
      %s25 = sadd.s32 1, %s21
    $region7: #{tpu_custom_call.1} parent=1 // loop_footer_branch
      %20 = sbr.rel target = $region3
    $region8: #{tpu_custom_call.1} parent=1 // loop_exit
      _
    %1306 = vsyncpa [#allocation3], 1
    %s1307 = scalar_lea.sflag [#allocation3], 1
    %1308 = vsyncpa %s1307, 1
    %1309 = vsyncpa [#allocation4], 1
    %s1310 = scalar_lea.sflag [#allocation4], 1
    %1311 = vsyncpa %s1310, 1

// kernel: tpu_custom_call.1
$region0: #{tpu_custom_call.1}
  #allocation0 [shape = 'u32[]', space=smem, size = 0x4, offset = 0x4, fixed_abs, tag = 'smem constant byte address 0x4 - core index']
  #allocation1 [shape = 'u32[72,128]{1,0:T(1,128)}', space=vmem, size = 0x9000, scoped, tag = 'internal scratch']
  %s0 = inlined_call_operand.vmem [shape: bf16[16,32], index: 0, kind: input, shape index: {}]
  %s1 = inlined_call_operand.vmem [shape: bf16[16,32], index: 1, kind: input, shape index: {}]
  %s2 = inlined_call_operand.hbm [shape: bf16[2,8,8], index: 2, kind: input, shape index: {}]
  %s3 = inlined_call_operand.vmem [shape: bf16[32,192], index: 3, kind: input, shape index: {}]
  %s4 = inlined_call_operand.vmem [shape: f32[1,192], index: 4, kind: input, shape index: {}]
  %s5 = inlined_call_operand.vmem [shape: bf16[64,32], index: 5, kind: input, shape index: {}]
  %s6 = inlined_call_operand.vmem [shape: f32[1,32], index: 6, kind: input, shape index: {}]
  %s7 = inlined_call_operand.vmem [shape: f32[1,32], index: 7, kind: input, shape index: {}]
  %s8 = inlined_call_operand.vmem [shape: f32[1,32], index: 8, kind: input, shape index: {}]
  %s9 = inlined_call_operand.hbm [shape: f32[16,32], index: 9, kind: output, shape index: {}]
  %s10 = sld [smem:[#allocation0]]
  $region73: #{tpu_custom_call.1} parent=0
    _
  %s12 = ssub.s32 1, %s10
  %s13 = scalar_select 0, %s12, %s10
  $region1: #{tpu_custom_call.1} parent=0
    #allocation2 [shape = 'u8[4096]{0}', space=vmem, size = 0x1000, scoped, tag = 'input window, operand 2']
    #allocation3 [shape = 's32[2]{0}', space=sflag, size = 0x8, scoped, tag = 'scoped memory for tpu_custom_call.1']
    #allocation4 [shape = 's32[2]{0}', space=sflag, size = 0x8, scoped, tag = 'scoped memory for tpu_custom_call.1']
    #allocation5 [shape = 'u8[8192]{0}', space=vmem, size = 0x2000, scoped, tag = 'output window, operand 0']
    %14 = vsyncpa [#allocation3], 0
    %s15 = scalar_lea.sflag [#allocation3], 1
    %16 = vsyncpa %s15, 0
    %17 = vsyncpa [#allocation4], 0
    %s18 = scalar_lea.sflag [#allocation4], 1
    %19 = vsyncpa %s18, 0
    loop: start=0, step=1, limit=4
    $region2: #{tpu_custom_call.1} parent=1 // loop_pre_header
      _
    $region3: #{tpu_custom_call.1} parent=1 // loop_header
      %s21 = sphi 0, %s25
      %p22 = scmp.ge.s32.totalorder %s21, 4
      %s31 = sphi 0, %s33
      %s34 = sphi 0, %s31
      %s35 = sphi 0, %s34
      %s51 = sphi 0, %s35
      %s57 = sphi 0, %s59
      %s60 = sphi 0, %s57
      %s61 = sphi 0, %s60
      %s77 = sphi 0, %s61
      %s83 = sphi 0, %s85
      %s86 = sphi 0, %s83
      %s87 = sphi 0, %s86
      %s103 = sphi 0, %s87
      %s107 = sphi 0, %s107
      %s109 = sphi 0, %s107
      %s110 = sphi 0, %s109
      %s124 = sphi 0, %s110
      %s128 = sphi 0, %s128
      %s130 = sphi 0, %s128
      %s131 = sphi 0, %s130
      %s145 = sphi 0, %s131
      %s149 = sphi 0, %s149
      %s151 = sphi 0, %s149
      %s152 = sphi 0, %s151
      %s166 = sphi 0, %s152
      %s170 = sphi 0, %s170
      %s172 = sphi 0, %s170
      %s173 = sphi 0, %s172
      %s187 = sphi 0, %s173
      %s191 = sphi 0, %s191
      %s193 = sphi 0, %s191
      %s194 = sphi 0, %s193
      %s208 = sphi 0, %s194
      %s212 = sphi 0, %s212
      %s214 = sphi 0, %s212
      %s215 = sphi 0, %s214
      %s229 = sphi 0, %s215
      %s235 = sphi 0, %s237
      %s238 = sphi 0, %s235
      %s239 = sphi 0, %s238
      %s255 = sphi 0, %s239
    $region4: #{tpu_custom_call.1} parent=1 // loop_header_branch
      %24 = sbr.rel (%p22) target = $region8
    $region5: #{tpu_custom_call.1} parent=1 // loop_body
      %s26 = ssub.s32 %s21, 1
      %s27 = ssub.s32 %s21, 2
      %s28 = sadd.s32 %s21, 1
      %s29 = ssub.s32 %s21, %s28
      %p30 = scmp.eq.s32.totalorder %s29, 0
      %s32 = sadd.s32 %s31, 1
      %s33 = scalar_select %p30, %s31, %s32
      %p36 = pneg %p30
      %p37 = scmp.eq.s32.totalorder %s21, 1
      %p38 = por %p36, %p37
      %p39 = scmp.ne.s32.totalorder %s31, %s34
      %p40 = scmp.eq.s32.totalorder %s21, 0
      %p41 = por %p39, %p40
      %p42 = scmp.ne.s32.totalorder %s31, %s34
      %p43 = scmp.eq.s32.totalorder %s26, 1
      %p44 = por %p42, %p43
      %p45 = scmp.ne.s32.totalorder %s34, %s35
      %p46 = scmp.eq.s32.totalorder %s26, 0
      %p47 = por %p45, %p46
      %p48 = scmp.ne.s32.totalorder %s34, %s35
      %p49 = scmp.eq.s32.totalorder %s27, 1
      %p50 = por %p48, %p49
      %p52 = scmp.ne.s32.totalorder %s35, %s51
      %p53 = scmp.eq.s32.totalorder %s27, 0
      %p54 = por %p52, %p53
      %s55 = ssub.s32 %s21, %s28
      %p56 = scmp.eq.s32.totalorder %s55, 0
      %s58 = sadd.s32 %s57, 1
      %s59 = scalar_select %p56, %s57, %s58
      %p62 = pneg %p56
      %p63 = scmp.eq.s32.totalorder %s21, 1
      %p64 = por %p62, %p63
      %p65 = scmp.ne.s32.totalorder %s57, %s60
      %p66 = scmp.eq.s32.totalorder %s21, 0
      %p67 = por %p65, %p66
      %p68 = scmp.ne.s32.totalorder %s57, %s60
      %p69 = scmp.eq.s32.totalorder %s26, 1
      %p70 = por %p68, %p69
      %p71 = scmp.ne.s32.totalorder %s60, %s61
      %p72 = scmp.eq.s32.totalorder %s26, 0
      %p73 = por %p71, %p72
      %p74 = scmp.ne.s32.totalorder %s60, %s61
      %p75 = scmp.eq.s32.totalorder %s27, 1
      %p76 = por %p74, %p75
      %p78 = scmp.ne.s32.totalorder %s61, %s77
      %p79 = scmp.eq.s32.totalorder %s27, 0
      %p80 = por %p78, %p79
      %s81 = ssub.s32 %s21, %s28
      %p82 = scmp.eq.s32.totalorder %s81, 0
      %s84 = sadd.s32 %s83, 1
      %s85 = scalar_select %p82, %s83, %s84
      %p88 = pneg %p82
      %p89 = scmp.eq.s32.totalorder %s21, 1
      %p90 = por %p88, %p89
      %p91 = scmp.ne.s32.totalorder %s83, %s86
      %p92 = scmp.eq.s32.totalorder %s21, 0
      %p93 = por %p91, %p92
      %p94 = scmp.ne.s32.totalorder %s83, %s86
      %p95 = scmp.eq.s32.totalorder %s26, 1
      %p96 = por %p94, %p95
      %p97 = scmp.ne.s32.totalorder %s86, %s87
      %p98 = scmp.eq.s32.totalorder %s26, 0
      %p99 = por %p97, %p98
      %p100 = scmp.ne.s32.totalorder %s86, %s87
      %p101 = scmp.eq.s32.totalorder %s27, 1
      %p102 = por %p100, %p101
      %p104 = scmp.ne.s32.totalorder %s87, %s103
      %p105 = scmp.eq.s32.totalorder %s27, 0
      %p106 = por %p104, %p105
      %s108 = sadd.s32 %s107, 1
      %p111 = scmp.eq.s32.totalorder %s21, 1
      %p112 = scmp.ne.s32.totalorder %s107, %s109
      %p113 = scmp.eq.s32.totalorder %s21, 0
      %p114 = por %p112, %p113
      %p115 = scmp.ne.s32.totalorder %s107, %s109
      %p116 = scmp.eq.s32.totalorder %s26, 1
      %p117 = por %p115, %p116
      %p118 = scmp.ne.s32.totalorder %s109, %s110
      %p119 = scmp.eq.s32.totalorder %s26, 0
      %p120 = por %p118, %p119
      %p121 = scmp.ne.s32.totalorder %s109, %s110
      %p122 = scmp.eq.s32.totalorder %s27, 1
      %p123 = por %p121, %p122
      %p125 = scmp.ne.s32.totalorder %s110, %s124
      %p126 = scmp.eq.s32.totalorder %s27, 0
      %p127 = por %p125, %p126
      %s129 = sadd.s32 %s128, 1
      %p132 = scmp.eq.s32.totalorder %s21, 1
      %p133 = scmp.ne.s32.totalorder %s128, %s130
      %p134 = scmp.eq.s32.totalorder %s21, 0
      %p135 = por %p133, %p134
      %p136 = scmp.ne.s32.totalorder %s128, %s130
      %p137 = scmp.eq.s32.totalorder %s26, 1
      %p138 = por %p136, %p137
      %p139 = scmp.ne.s32.totalorder %s130, %s131
      %p140 = scmp.eq.s32.totalorder %s26, 0
      %p141 = por %p139, %p140
      %p142 = scmp.ne.s32.totalorder %s130, %s131
      %p143 = scmp.eq.s32.totalorder %s27, 1
      %p144 = por %p142, %p143
      %p146 = scmp.ne.s32.totalorder %s131, %s145
      %p147 = scmp.eq.s32.totalorder %s27, 0
      %p148 = por %p146, %p147
      %s150 = sadd.s32 %s149, 1
      %p153 = scmp.eq.s32.totalorder %s21, 1
      %p154 = scmp.ne.s32.totalorder %s149, %s151
      %p155 = scmp.eq.s32.totalorder %s21, 0
      %p156 = por %p154, %p155
      %p157 = scmp.ne.s32.totalorder %s149, %s151
      %p158 = scmp.eq.s32.totalorder %s26, 1
      %p159 = por %p157, %p158
      %p160 = scmp.ne.s32.totalorder %s151, %s152
      %p161 = scmp.eq.s32.totalorder %s26, 0
      %p162 = por %p160, %p161
      %p163 = scmp.ne.s32.totalorder %s151, %s152
      %p164 = scmp.eq.s32.totalorder %s27, 1
      %p165 = por %p163, %p164
      %p167 = scmp.ne.s32.totalorder %s152, %s166
      %p168 = scmp.eq.s32.totalorder %s27, 0
      %p169 = por %p167, %p168
      %s171 = sadd.s32 %s170, 1
      %p174 = scmp.eq.s32.totalorder %s21, 1
      %p175 = scmp.ne.s32.totalorder %s170, %s172
      %p176 = scmp.eq.s32.totalorder %s21, 0
      %p177 = por %p175, %p176
      %p178 = scmp.ne.s32.totalorder %s170, %s172
      %p179 = scmp.eq.s32.totalorder %s26, 1
      %p180 = por %p178, %p179
      %p181 = scmp.ne.s32.totalorder %s172, %s173
      %p182 = scmp.eq.s32.totalorder %s26, 0
      %p183 = por %p181, %p182
      %p184 = scmp.ne.s32.totalorder %s172, %s173
      %p185 = scmp.eq.s32.totalorder %s27, 1
      %p186 = por %p184, %p185
      %p188 = scmp.ne.s32.totalorder %s173, %s187
      %p189 = scmp.eq.s32.totalorder %s27, 0
      %p190 = por %p188, %p189
      %s192 = sadd.s32 %s191, 1
      %p195 = scmp.eq.s32.totalorder %s21, 1
      %p196 = scmp.ne.s32.totalorder %s191, %s193
      %p197 = scmp.eq.s32.totalorder %s21, 0
      %p198 = por %p196, %p197
      %p199 = scmp.ne.s32.totalorder %s191, %s193
      %p200 = scmp.eq.s32.totalorder %s26, 1
      %p201 = por %p199, %p200
      %p202 = scmp.ne.s32.totalorder %s193, %s194
      %p203 = scmp.eq.s32.totalorder %s26, 0
      %p204 = por %p202, %p203
      %p205 = scmp.ne.s32.totalorder %s193, %s194
      %p206 = scmp.eq.s32.totalorder %s27, 1
      %p207 = por %p205, %p206
      %p209 = scmp.ne.s32.totalorder %s194, %s208
      %p210 = scmp.eq.s32.totalorder %s27, 0
      %p211 = por %p209, %p210
      %s213 = sadd.s32 %s212, 1
      %p216 = scmp.eq.s32.totalorder %s21, 1
      %p217 = scmp.ne.s32.totalorder %s212, %s214
      %p218 = scmp.eq.s32.totalorder %s21, 0
      %p219 = por %p217, %p218
      %p220 = scmp.ne.s32.totalorder %s212, %s214
      %p221 = scmp.eq.s32.totalorder %s26, 1
      %p222 = por %p220, %p221
      %p223 = scmp.ne.s32.totalorder %s214, %s215
      %p224 = scmp.eq.s32.totalorder %s26, 0
      %p225 = por %p223, %p224
      %p226 = scmp.ne.s32.totalorder %s214, %s215
      %p227 = scmp.eq.s32.totalorder %s27, 1
      %p228 = por %p226, %p227
      %p230 = scmp.ne.s32.totalorder %s215, %s229
      %p231 = scmp.eq.s32.totalorder %s27, 0
      %p232 = por %p230, %p231
      %s233 = ssub.s32 %s21, %s28
      %p234 = scmp.eq.s32.totalorder %s233, 0
      %s236 = sadd.s32 %s235, 1
      %s237 = scalar_select %p234, %s235, %s236
      %p240 = pneg %p234
      %p241 = scmp.eq.s32.totalorder %s21, 1
      %p242 = por %p240, %p241
      %p243 = scmp.ne.s32.totalorder %s235, %s238
      %p244 = scmp.eq.s32.totalorder %s21, 0
      %p245 = por %p243, %p244
      %p246 = scmp.ne.s32.totalorder %s235, %s238
      %p247 = scmp.eq.s32.totalorder %s26, 1
      %p248 = por %p246, %p247
      %p249 = scmp.ne.s32.totalorder %s238, %s239
      %p250 = scmp.eq.s32.totalorder %s26, 0
      %p251 = por %p249, %p250
      %p252 = scmp.ne.s32.totalorder %s238, %s239
      %p253 = scmp.eq.s32.totalorder %s27, 1
      %p254 = por %p252, %p253
      %p256 = scmp.ne.s32.totalorder %s239, %s255
      %p257 = scmp.eq.s32.totalorder %s27, 0
      %p258 = por %p256, %p257
      %p259 = scmp.le.s32.totalorder 1, %s21
      %p260 = scmp.lt.s32.totalorder %s21, 3
      %p261 = pnand %p259, %p260
      %p262 = pneg %p261
      // Predicated region
      $region9: #{tpu_custom_call.1} parent=5 // pred_check
        _
      $region10: #{tpu_custom_call.1} parent=5 // pred_check_branch
        %264 = sbr.rel (%p261) target = $region12
      $region11: #{tpu_custom_call.1} parent=5 // pred_region
        %s265 = ssub.s32 %s21, 1
        // Predicated region
        $region13: #{tpu_custom_call.1} parent=11 // pred_check
          %p266 = pneg %p120
        $region14: #{tpu_custom_call.1} parent=11 // pred_check_branch
          %268 = sbr.rel (%p266) target = $region16
        $region15: #{tpu_custom_call.1} parent=11 // pred_region
          _
        $region16: #{tpu_custom_call.1} parent=11 // pred_fallthru
          _
        // Predicated region
        $region17: #{tpu_custom_call.1} parent=11 // pred_check
          %p269 = pneg %p141
        $region18: #{tpu_custom_call.1} parent=11 // pred_check_branch
          %271 = sbr.rel (%p269) target = $region20
        $region19: #{tpu_custom_call.1} parent=11 // pred_region
          _
        $region20: #{tpu_custom_call.1} parent=11 // pred_fallthru
          _
        // Predicated region
        $region21: #{tpu_custom_call.1} parent=11 // pred_check
          %p272 = pneg %p162
        $region22: #{tpu_custom_call.1} parent=11 // pred_check_branch
          %274 = sbr.rel (%p272) target = $region24
        $region23: #{tpu_custom_call.1} parent=11 // pred_region
          _
        $region24: #{tpu_custom_call.1} parent=11 // pred_fallthru
          _
        // Predicated region
        $region25: #{tpu_custom_call.1} parent=11 // pred_check
          %p275 = pneg %p183
        $region26: #{tpu_custom_call.1} parent=11 // pred_check_branch
          %277 = sbr.rel (%p275) target = $region28
        $region27: #{tpu_custom_call.1} parent=11 // pred_region
          _
        $region28: #{tpu_custom_call.1} parent=11 // pred_fallthru
          _
        // Predicated region
        $region29: #{tpu_custom_call.1} parent=11 // pred_check
          %p278 = pneg %p204
        $region30: #{tpu_custom_call.1} parent=11 // pred_check_branch
          %280 = sbr.rel (%p278) target = $region32
        $region31: #{tpu_custom_call.1} parent=11 // pred_region
          _
        $region32: #{tpu_custom_call.1} parent=11 // pred_fallthru
          _
        // Predicated region
        $region33: #{tpu_custom_call.1} parent=11 // pred_check
          %p281 = pneg %p225
        $region34: #{tpu_custom_call.1} parent=11 // pred_check_branch
          %283 = sbr.rel (%p281) target = $region36
        $region35: #{tpu_custom_call.1} parent=11 // pred_region
          _
        $region36: #{tpu_custom_call.1} parent=11 // pred_fallthru
          _
      $region12: #{tpu_custom_call.1} parent=5 // pred_fallthru
        _
      %p284 = scmp.lt.s32.totalorder %s21, 2
      // Predicated region
      $region37: #{tpu_custom_call.1} parent=5 // pred_check
        %p285 = pneg %p284
      $region38: #{tpu_custom_call.1} parent=5 // pred_check_branch
        %287 = sbr.rel (%p285) target = $region40
      $region39: #{tpu_custom_call.1} parent=5 // pred_region
        // Predicated region
        $region41: #{tpu_custom_call.1} parent=39 // pred_check
          %p288 = pneg %p41
        $region42: #{tpu_custom_call.1} parent=39 // pred_check_branch
          %290 = sbr.rel (%p288) target = $region44
        $region43: #{tpu_custom_call.1} parent=39 // pred_region
          %p291 = scmp.lt.s32.totalorder %s21, 1
          %s292 = scalar_select %p291, %s21, 1
          %s293 = smul.addr %s292, 4
          %s294 = scalar_lea.vmem %s0, %s293
        $region44: #{tpu_custom_call.1} parent=39 // pred_fallthru
          _
        // Predicated region
        $region45: #{tpu_custom_call.1} parent=39 // pred_check
          %p295 = pneg %p67
        $region46: #{tpu_custom_call.1} parent=39 // pred_check_branch
          %297 = sbr.rel (%p295) target = $region48
        $region47: #{tpu_custom_call.1} parent=39 // pred_region
          %p298 = scmp.lt.s32.totalorder %s21, 1
          %s299 = scalar_select %p298, %s21, 1
          %s300 = smul.addr %s299, 4
          %s301 = scalar_lea.vmem %s1, %s300
        $region48: #{tpu_custom_call.1} parent=39 // pred_fallthru
          _
        // Predicated region
        $region49: #{tpu_custom_call.1} parent=39 // pred_check
          %p302 = pneg %p93
        $region50: #{tpu_custom_call.1} parent=39 // pred_check_branch
          %304 = sbr.rel (%p302) target = $region52
        $region51: #{tpu_custom_call.1} parent=39 // pred_region
          %s305 = sand.u32 %s83, 1
          %s306 = scalar_lea.sflag [#allocation3], %s305
          %s307 = sand.u32 %s83, 1
          %s308 = smul.addr %s307, 4
          %s309 = scalar_lea.vmem [#allocation2], %s308
          %311 = vsyncadd %s306, 0
          %s312 = smul.addr %s21, 4
          %s313 = scalar_lea.hbm %s2, %s312
          %s315 = sshll.u32 %s313, 4
          %s316 = int_to_ptr.hbm [resolvable:$true] %s315
          %s317 = sshll.u32 %s309, 4
          %s318 = int_to_ptr.vmem [resolvable:$true] %s317
          %320 = dma.hbm_to_vmem [thread:$0]  %s316, 64, %s318, %s306
        $region52: #{tpu_custom_call.1} parent=39 // pred_fallthru
          _
      $region40: #{tpu_custom_call.1} parent=5 // pred_fallthru
        _
      %p321 = scmp.le.s32.totalorder 1, %s21
      %p322 = scmp.lt.s32.totalorder %s21, 3
      %p323 = pnand %p321, %p322
      %p324 = pneg %p323
      // Predicated region
      $region53: #{tpu_custom_call.1} parent=5 // pred_check
        _
      $region54: #{tpu_custom_call.1} parent=5 // pred_check_branch
        %326 = sbr.rel (%p323) target = $region56
      $region55: #{tpu_custom_call.1} parent=5 // pred_region
        %s327 = ssub.s32 %s21, 1
        %s328 = sand.u32 %s86, 1
        %s329 = scalar_lea.sflag [#allocation3], %s328
        %s330 = sand.u32 %s86, 1
        %s331 = smul.addr %s330, 4
        %s332 = scalar_lea.vmem [#allocation2], %s331
        // Predicated region
        $region57: #{tpu_custom_call.1} parent=55 // pred_check
          %p333 = pneg %p99
        $region58: #{tpu_custom_call.1} parent=55 // pred_check_branch
          %335 = sbr.rel (%p333) target = $region60
        $region59: #{tpu_custom_call.1} parent=55 // pred_region
          %337 = dma.done %s329, 64
        $region60: #{tpu_custom_call.1} parent=55 // pred_fallthru
          _
        %p338 = scmp.lt.s32.totalorder %s26, 1
        %s339 = scalar_select %p338, %s26, 1
        %s340 = smul.addr %s339, 4
        %s341 = scalar_lea.vmem %s0, %s340
        %p342 = pneg %p47
        %p343 = pneg %p44
        %p344 = scmp.lt.s32.totalorder %s26, 1
        %s345 = scalar_select %p344, %s26, 1
        %s346 = smul.addr %s345, 4
        %s347 = scalar_lea.vmem %s1, %s346
        %p348 = pneg %p73
        %p349 = pneg %p70
        %s350 = sand.u32 %s86, 1
        %s351 = scalar_lea.sflag [#allocation3], %s350
        %s352 = sand.u32 %s86, 1
        %s353 = smul.addr %s352, 4
        %s354 = scalar_lea.vmem [#allocation2], %s353
        %p355 = pneg %p99
        %p356 = pneg %p96
        %p357 = pneg %p120
        %p358 = pneg %p117
        %p359 = pneg %p141
        %p360 = pneg %p138
        %p361 = pneg %p162
        %p362 = pneg %p159
        %p363 = pneg %p183
        %p364 = pneg %p180
        %p365 = pneg %p204
        %p366 = pneg %p201
        %p367 = pneg %p225
        %p368 = pneg %p222
        %p369 = pneg %p251
        %p370 = pneg %p248
        %s371 = sand.u32 %s238, 1
        %s372 = scalar_lea.sflag [#allocation4], %s371
        %s373 = sand.u32 %s238, 1
        %s374 = smul.addr %s373, 8
        %s375 = scalar_lea.vmem [#allocation5], %s374
        %p376 = scmp.lt.s32.totalorder %s26, 1
        %s377 = scalar_select %p376, %s26, 1
        %s378 = smul.addr %s377, 4
        %s379 = scalar_lea.vmem %s0, %s378
        %p380 = scmp.lt.s32.totalorder %s26, 1
        %s381 = scalar_select %p380, %s26, 1
        %s382 = smul.addr %s381, 4
        %s383 = scalar_lea.vmem %s1, %s382
        %v385 = vld [vmem:[%s379] sm:$0xf]
        %v386 = vld [vmem:[%s3] sm:$0xff]
        %v387 = vld [vmem:[%s3 + $0x8] sm:$0xff]
        %v388 = vld [vmem:[%s3 + $0x10] sm:$0xff]
        %v389 = vld [vmem:[%s3 + $0x18] sm:$0xff]
        %v390 = vld [vmem:[%s4] sm:$0x3]
        %v391 = vld [vmem:[%s383] sm:$0xf]
        %v393 = vperm.slane %v390, 0
        %v399 = vunpack.c.l.b16 %v386
        %v400 = vunpack.c.l.b16 %v387
        %v401 = vunpack.c.l.b16 %v388
        %v402 = vunpack.c.l.b16 %v389
        %v403 = vpack.c.b16 %v400, %v399
        %v404 = vpack.c.b16 %v402, %v401
        %vm407 = vcmask 261120
        %v409 = vsel %vm407, %v385, 0
        %411 = vmatpush.bf16.msra.mxu0 0
        %412 = vmatpush.bf16.msra.mxu0 0
        %413 = vmatpush.bf16.msra.mxu0 0
        %414 = vmatpush.bf16.msra.mxu0 0
        %415 = vmatpush.bf16.msra.mxu0 0
        %416 = vmatpush.bf16.msra.mxu0 0
        %417 = vmatpush.bf16.msra.mxu0 %v404
        %418 = vmatpush.bf16.msra.mxu0 %v403
        %419 = vmatmul.bf16.gmra.mxu0 %v409
        %v420 = vpop.f32.mrf.mxu0
        %v421 = vadd.f32 %v393, %v420
        %v422 = vpop.f32.mrf.mxu0
        %423 = vdwg.mxu0
        %v424 = vperm.slane %v390, 1
        %v425 = vunpack.c.h.b16 %v386
        %v426 = vunpack.c.h.b16 %v387
        %v427 = vunpack.c.h.b16 %v388
        %v428 = vunpack.c.h.b16 %v389
        %v429 = vpack.c.b16 %v426, %v425
        %v430 = vpack.c.b16 %v428, %v427
        %431 = vrot.lane.b32.xlu0 %v403, 64
        %v432 = vpop.permute.xlu0 %431
        %433 = vrot.lane.b32.xlu0 %v429, 64
        %v434 = vpop.permute.xlu0 %433
        %435 = vrot.lane.b32.xlu0 %v404, 64
        %v436 = vpop.permute.xlu0 %435
        %437 = vrot.lane.b32.xlu0 %v430, 64
        %v438 = vpop.permute.xlu0 %437
        %vm439 = vcmask 523264
        %v440 = vsel %vm439, %v432, %v434
        %v441 = vsel %vm439, %v436, %v438
        %444 = vrot.lane.b32.xlu0 %v393, 64
        %v445 = vpop.permute.xlu0 %444
        %446 = vrot.lane.b32.xlu0 %v424, 64
        %v447 = vpop.permute.xlu0 %446
        %vm448 = vcmask 523264
        %v449 = vsel %vm448, %v445, %v447
        %v452 = vsel %vm407, %v391, 0
        %454 = vmatpush.bf16.msra.mxu0 0
        %455 = vmatpush.bf16.msra.mxu0 0
        %456 = vmatpush.bf16.msra.mxu0 0
        %457 = vmatpush.bf16.msra.mxu0 0
        %458 = vmatpush.bf16.msra.mxu0 0
        %459 = vmatpush.bf16.msra.mxu0 0
        %460 = vmatpush.bf16.msra.mxu0 %v441
        %461 = vmatpush.bf16.msra.mxu0 %v440
        %462 = vmatmul.bf16.gmra.mxu0 %v452
        %v463 = vpop.f32.mrf.mxu0
        %v464 = vadd.f32 %v449, %v463
        %v465 = vpop.f32.mrf.mxu0
        %466 = vdwg.mxu0
        %468 = vrot.lane.b32.xlu0 %v421, 112
        %v469 = vpop.permute.xlu0 %468
        %471 = vrot.lane.b32.xlu0 %v421, 96
        %v472 = vpop.permute.xlu0 %471
        %474 = vrot.lane.b32.xlu0 %v421, 80
        %v475 = vpop.permute.xlu0 %474
        %v477 = vrot.slane %v472, 4
        %vm478 = vcmask 1047556
        %v479 = vsel %vm478, %v477, %v421
        %v480 = vrot.slane %v421, 4
        %v481 = vsel %vm478, %v472, %v480
        %v483 = vunpack.c.l.s4 1983009808
        %v484 = vunpack.c.0.s8 %v483
        %v485 = vperm.slane %v479, %v484
        %v487 = vunpack.c.l.s4 1983009808
        %v488 = vunpack.c.0.s8 %v487
        %v489 = vperm.slane %v481, %v488
        %v490 = vrot.slane %v475, 4
        %v491 = vsel %vm478, %v490, %v469
        %v492 = vrot.slane %v469, 4
        %v493 = vsel %vm478, %v475, %v492
        %v495 = vunpack.c.l.s4 1983009808
        %v496 = vunpack.c.0.s8 %v495
        %v497 = vperm.slane %v491, %v496
        %v499 = vunpack.c.l.s4 1983009808
        %v500 = vunpack.c.0.s8 %v499
        %v501 = vperm.slane %v493, %v500
        %v502 = vrot.slane %v497, 4
        %v503 = vsel %vm478, %v502, %v485
        %v504 = vrot.slane %v485, 4
        %v505 = vsel %vm478, %v497, %v504
        %v507 = vunpack.c.l.s4 1934713408
        %v508 = vunpack.c.0.s8 %v507
        %v509 = vperm.slane %v503, %v508
        %v511 = vunpack.c.l.s4 1934713408
        %v512 = vunpack.c.0.s8 %v511
        %v513 = vperm.slane %v505, %v512
        %v514 = vrot.slane %v501, 4
        %v515 = vsel %vm478, %v514, %v489
        %v516 = vrot.slane %v489, 4
        %v517 = vsel %vm478, %v501, %v516
        %v519 = vunpack.c.l.s4 1934713408
        %v520 = vunpack.c.0.s8 %v519
        %v521 = vperm.slane %v515, %v520
        %v523 = vunpack.c.l.s4 1934713408
        %v524 = vunpack.c.0.s8 %v523
        %v525 = vperm.slane %v517, %v524
        %v526 = vrot.slane %v509, 4
        %v527 = vsel %vm478, 0.0, %v526
        %v528 = vrot.slane %v513, 4
        %v529 = vsel %vm478, 0.0, %v528
        %v530 = vrot.slane %v521, 4
        %v531 = vsel %vm478, 0.0, %v530
        %v532 = vrot.slane %v525, 4
        %v533 = vsel %vm478, 0.0, %v532
        %v534 = vsel %vm478, %v528, %v509
        %v536 = vunpack.c.l.s4 1983009808
        %v537 = vunpack.c.0.s8 %v536
        %v538 = vperm.slane %v534, %v537
        %v539 = vrot.slane %v529, 4
        %v540 = vsel %vm478, %v539, %v527
        %v542 = vunpack.c.l.s4 1983009808
        %v543 = vunpack.c.0.s8 %v542
        %v544 = vperm.slane %v540, %v543
        %v545 = vsel %vm478, %v532, %v521
        %v547 = vunpack.c.l.s4 1983009808
        %v548 = vunpack.c.0.s8 %v547
        %v549 = vperm.slane %v545, %v548
        %v550 = vrot.slane %v533, 4
        %v551 = vsel %vm478, %v550, %v531
        %v553 = vunpack.c.l.s4 1983009808
        %v554 = vunpack.c.0.s8 %v553
        %v555 = vperm.slane %v551, %v554
        %v556 = vrot.slane %v544, 4
        %v557 = vsel %vm478, %v556, %v538
        %v558 = vrot.slane %v538, 4
        %v559 = vsel %vm478, %v544, %v558
        %v561 = vunpack.c.l.s4 1934713408
        %v562 = vunpack.c.0.s8 %v561
        %v563 = vperm.slane %v557, %v562
        %v565 = vunpack.c.l.s4 1934713408
        %v566 = vunpack.c.0.s8 %v565
        %v567 = vperm.slane %v559, %v566
        %v568 = vrot.slane %v555, 4
        %v569 = vsel %vm478, %v568, %v549
        %v570 = vrot.slane %v549, 4
        %v571 = vsel %vm478, %v555, %v570
        %v573 = vunpack.c.l.s4 1934713408
        %v574 = vunpack.c.0.s8 %v573
        %v575 = vperm.slane %v569, %v574
        %v577 = vunpack.c.l.s4 1934713408
        %v578 = vunpack.c.0.s8 %v577
        %v579 = vperm.slane %v571, %v578
        %v580 = vrot.slane %v575, 4
        %v581 = vsel %vm478, %v580, %v563
        %v582 = vrot.slane %v563, 4
        %v583 = vsel %vm478, %v575, %v582
        %v584 = vrot.slane %v579, 4
        %v585 = vsel %vm478, %v584, %v567
        %v586 = vrot.slane %v567, 4
        %v587 = vsel %vm478, %v579, %v586
        %589 = vrot.lane.b32.xlu0 %v464, 112
        %v590 = vpop.permute.xlu0 %589
        %592 = vrot.lane.b32.xlu0 %v464, 96
        %v593 = vpop.permute.xlu0 %592
        %595 = vrot.lane.b32.xlu0 %v464, 80
        %v596 = vpop.permute.xlu0 %595
        %v598 = vrot.slane %v593, 4
        %v599 = vsel %vm478, %v598, %v464
        %v600 = vrot.slane %v464, 4
        %v601 = vsel %vm478, %v593, %v600
        %v603 = vunpack.c.l.s4 1983009808
        %v604 = vunpack.c.0.s8 %v603
        %v605 = vperm.slane %v599, %v604
        %v607 = vunpack.c.l.s4 1983009808
        %v608 = vunpack.c.0.s8 %v607
        %v609 = vperm.slane %v601, %v608
        %v610 = vrot.slane %v596, 4
        %v611 = vsel %vm478, %v610, %v590
        %v612 = vrot.slane %v590, 4
        %v613 = vsel %vm478, %v596, %v612
        %v615 = vunpack.c.l.s4 1983009808
        %v616 = vunpack.c.0.s8 %v615
        %v617 = vperm.slane %v611, %v616
        %v619 = vunpack.c.l.s4 1983009808
        %v620 = vunpack.c.0.s8 %v619
        %v621 = vperm.slane %v613, %v620
        %v622 = vrot.slane %v617, 4
        %v623 = vsel %vm478, %v622, %v605
        %v624 = vrot.slane %v605, 4
        %v625 = vsel %vm478, %v617, %v624
        %v627 = vunpack.c.l.s4 1934713408
        %v628 = vunpack.c.0.s8 %v627
        %v629 = vperm.slane %v623, %v628
        %v631 = vunpack.c.l.s4 1934713408
        %v632 = vunpack.c.0.s8 %v631
        %v633 = vperm.slane %v625, %v632
        %v634 = vrot.slane %v621, 4
        %v635 = vsel %vm478, %v634, %v609
        %v636 = vrot.slane %v609, 4
        %v637 = vsel %vm478, %v621, %v636
        %v639 = vunpack.c.l.s4 1934713408
        %v640 = vunpack.c.0.s8 %v639
        %v641 = vperm.slane %v635, %v640
        %v643 = vunpack.c.l.s4 1934713408
        %v644 = vunpack.c.0.s8 %v643
        %v645 = vperm.slane %v637, %v644
        %v646 = vrot.slane %v629, 4
        %v647 = vsel %vm478, 0.0, %v646
        %v648 = vrot.slane %v633, 4
        %v649 = vsel %vm478, 0.0, %v648
        %v650 = vrot.slane %v641, 4
        %v651 = vsel %vm478, 0.0, %v650
        %v652 = vrot.slane %v645, 4
        %v653 = vsel %vm478, 0.0, %v652
        %v654 = vsel %vm478, %v648, %v629
        %v656 = vunpack.c.l.s4 1983009808
        %v657 = vunpack.c.0.s8 %v656
        %v658 = vperm.slane %v654, %v657
        %v659 = vrot.slane %v649, 4
        %v660 = vsel %vm478, %v659, %v647
        %v662 = vunpack.c.l.s4 1983009808
        %v663 = vunpack.c.0.s8 %v662
        %v664 = vperm.slane %v660, %v663
        %v665 = vsel %vm478, %v652, %v641
        %v667 = vunpack.c.l.s4 1983009808
        %v668 = vunpack.c.0.s8 %v667
        %v669 = vperm.slane %v665, %v668
        %v670 = vrot.slane %v653, 4
        %v671 = vsel %vm478, %v670, %v651
        %v673 = vunpack.c.l.s4 1983009808
        %v674 = vunpack.c.0.s8 %v673
        %v675 = vperm.slane %v671, %v674
        %v676 = vrot.slane %v664, 4
        %v677 = vsel %vm478, %v676, %v658
        %v678 = vrot.slane %v658, 4
        %v679 = vsel %vm478, %v664, %v678
        %v681 = vunpack.c.l.s4 1934713408
        %v682 = vunpack.c.0.s8 %v681
        %v683 = vperm.slane %v677, %v682
        %v685 = vunpack.c.l.s4 1934713408
        %v686 = vunpack.c.0.s8 %v685
        %v687 = vperm.slane %v679, %v686
        %v688 = vrot.slane %v675, 4
        %v689 = vsel %vm478, %v688, %v669
        %v690 = vrot.slane %v669, 4
        %v691 = vsel %vm478, %v675, %v690
        %v693 = vunpack.c.l.s4 1934713408
        %v694 = vunpack.c.0.s8 %v693
        %v695 = vperm.slane %v689, %v694
        %v697 = vunpack.c.l.s4 1934713408
        %v698 = vunpack.c.0.s8 %v697
        %v699 = vperm.slane %v691, %v698
        %v700 = vrot.slane %v695, 4
        %v701 = vsel %vm478, %v700, %v683
        %v702 = vrot.slane %v683, 4
        %v703 = vsel %vm478, %v695, %v702
        %v704 = vrot.slane %v699, 4
        %v705 = vsel %vm478, %v704, %v687
        %v706 = vrot.slane %v687, 4
        %v707 = vsel %vm478, %v699, %v706
        %708 = vrot.lane.b32.xlu0 %v464, 64
        %v709 = vpop.permute.xlu0 %708
        %710 = vrot.lane.b32.xlu0 %v590, 64
        %v711 = vpop.permute.xlu0 %710
        %712 = vrot.lane.b32.xlu0 %v593, 64
        %v713 = vpop.permute.xlu0 %712
        %714 = vrot.lane.b32.xlu0 %v596, 64
        %v715 = vpop.permute.xlu0 %714
        %v720 = vrot.slane %v713, 4
        %v721 = vsel %vm478, %v720, %v709
        %v722 = vrot.slane %v709, 4
        %v723 = vsel %vm478, %v713, %v722
        %v725 = vunpack.c.l.s4 1983009808
        %v726 = vunpack.c.0.s8 %v725
        %v727 = vperm.slane %v721, %v726
        %v729 = vunpack.c.l.s4 1983009808
        %v730 = vunpack.c.0.s8 %v729
        %v731 = vperm.slane %v723, %v730
        %v732 = vrot.slane %v715, 4
        %v733 = vsel %vm478, %v732, %v711
        %v734 = vrot.slane %v711, 4
        %v735 = vsel %vm478, %v715, %v734
        %v737 = vunpack.c.l.s4 1983009808
        %v738 = vunpack.c.0.s8 %v737
        %v739 = vperm.slane %v733, %v738
        %v741 = vunpack.c.l.s4 1983009808
        %v742 = vunpack.c.0.s8 %v741
        %v743 = vperm.slane %v735, %v742
        %v744 = vrot.slane %v739, 4
        %v745 = vsel %vm478, %v744, %v727
        %v746 = vrot.slane %v727, 4
        %v747 = vsel %vm478, %v739, %v746
        %v749 = vunpack.c.l.s4 1934713408
        %v750 = vunpack.c.0.s8 %v749
        %v751 = vperm.slane %v745, %v750
        %v753 = vunpack.c.l.s4 1934713408
        %v754 = vunpack.c.0.s8 %v753
        %v755 = vperm.slane %v747, %v754
        %v756 = vrot.slane %v743, 4
        %v757 = vsel %vm478, %v756, %v731
        %v758 = vrot.slane %v731, 4
        %v759 = vsel %vm478, %v743, %v758
        %v761 = vunpack.c.l.s4 1934713408
        %v762 = vunpack.c.0.s8 %v761
        %v763 = vperm.slane %v757, %v762
        %v765 = vunpack.c.l.s4 1934713408
        %v766 = vunpack.c.0.s8 %v765
        %v767 = vperm.slane %v759, %v766
        %v768 = vrot.slane %v751, 4
        %v769 = vsel %vm478, 0.0, %v768
        %v770 = vrot.slane %v755, 4
        %v771 = vsel %vm478, 0.0, %v770
        %v772 = vrot.slane %v763, 4
        %v773 = vsel %vm478, 0.0, %v772
        %v774 = vrot.slane %v767, 4
        %v775 = vsel %vm478, 0.0, %v774
        %v776 = vsel %vm478, %v770, %v751
        %v778 = vunpack.c.l.s4 1983009808
        %v779 = vunpack.c.0.s8 %v778
        %v780 = vperm.slane %v776, %v779
        %v781 = vrot.slane %v771, 4
        %v782 = vsel %vm478, %v781, %v769
        %v784 = vunpack.c.l.s4 1983009808
        %v785 = vunpack.c.0.s8 %v784
        %v786 = vperm.slane %v782, %v785
        %v787 = vsel %vm478, %v774, %v763
        %v789 = vunpack.c.l.s4 1983009808
        %v790 = vunpack.c.0.s8 %v789
        %v791 = vperm.slane %v787, %v790
        %v792 = vrot.slane %v775, 4
        %v793 = vsel %vm478, %v792, %v773
        %v795 = vunpack.c.l.s4 1983009808
        %v796 = vunpack.c.0.s8 %v795
        %v797 = vperm.slane %v793, %v796
        %v798 = vrot.slane %v786, 4
        %v799 = vsel %vm478, %v798, %v780
        %v800 = vrot.slane %v780, 4
        %v801 = vsel %vm478, %v786, %v800
        %v803 = vunpack.c.l.s4 1934713408
        %v804 = vunpack.c.0.s8 %v803
        %v805 = vperm.slane %v799, %v804
        %v807 = vunpack.c.l.s4 1934713408
        %v808 = vunpack.c.0.s8 %v807
        %v809 = vperm.slane %v801, %v808
        %v810 = vrot.slane %v797, 4
        %v811 = vsel %vm478, %v810, %v791
        %v812 = vrot.slane %v791, 4
        %v813 = vsel %vm478, %v797, %v812
        %v815 = vunpack.c.l.s4 1934713408
        %v816 = vunpack.c.0.s8 %v815
        %v817 = vperm.slane %v811, %v816
        %v819 = vunpack.c.l.s4 1934713408
        %v820 = vunpack.c.0.s8 %v819
        %v821 = vperm.slane %v813, %v820
        %v822 = vrot.slane %v817, 4
        %v823 = vsel %vm478, %v822, %v805
        %v824 = vrot.slane %v805, 4
        %v825 = vsel %vm478, %v817, %v824
        %v826 = vrot.slane %v821, 4
        %v827 = vsel %vm478, %v826, %v809
        %v828 = vrot.slane %v809, 4
        %v829 = vsel %vm478, %v821, %v828
        %v830 = vpack.c.bf16 %v581, %v581
        %v831 = vpack.c.bf16 %v583, %v583
        %v832 = vpack.c.bf16 %v585, %v585
        %v833 = vpack.c.bf16 %v587, %v587
        %v834 = vpack.c.bf16 %v701, %v701
        %v835 = vpack.c.bf16 %v703, %v703
        %v836 = vpack.c.bf16 %v705, %v705
        %v837 = vpack.c.bf16 %v707, %v707
        %v838 = vpack.c.bf16 %v823, %v823
        %v839 = vpack.c.bf16 %v825, %v825
        %v840 = vpack.c.bf16 %v827, %v827
        %v841 = vpack.c.bf16 %v829, %v829
        %vm842 = vcmask 130048
        %v844 = vsel %vm842, %v830, 0
        %v847 = vsel %vm842, %v834, 0
        %849 = vmatpush.bf16.xpose.msra.mxu0 0
        %850 = vmatpush.bf16.xpose.msra.mxu0 0
        %851 = vmatpush.bf16.xpose.msra.mxu0 0
        %852 = vmatpush.bf16.xpose.msra.mxu0 0
        %853 = vmatpush.bf16.xpose.msra.mxu0 0
        %854 = vmatpush.bf16.xpose.msra.mxu0 0
        %855 = vmatpush.bf16.xpose.msra.mxu0 0
        %856 = vmatpush.bf16.xpose.msra.mxu0 %v847
        %857 = vmatmul.bf16.gmra.mxu0 %v844
        %v858 = vpop.f32.mrf.mxu0
        %v859 = vadd.f32 0.0, %v858
        %v860 = vpop.f32.mrf.mxu0
        %861 = vdwg.mxu0
        %v863 = vsel %vm842, %v831, 0
        %v866 = vsel %vm842, %v835, 0
        %868 = vmatpush.bf16.xpose.msra.mxu0 0
        %869 = vmatpush.bf16.xpose.msra.mxu0 0
        %870 = vmatpush.bf16.xpose.msra.mxu0 0
        %871 = vmatpush.bf16.xpose.msra.mxu0 0
        %872 = vmatpush.bf16.xpose.msra.mxu0 0
        %873 = vmatpush.bf16.xpose.msra.mxu0 0
        %874 = vmatpush.bf16.xpose.msra.mxu0 0
        %875 = vmatpush.bf16.xpose.msra.mxu0 %v866
        %876 = vmatmul.bf16.gmra.mxu0 %v863
        %v877 = vpop.f32.mrf.mxu0
        %v878 = vadd.f32 0.0, %v877
        %v879 = vpop.f32.mrf.mxu0
        %880 = vdwg.mxu0
        %v882 = vsel %vm842, %v832, 0
        %v885 = vsel %vm842, %v836, 0
        %887 = vmatpush.bf16.xpose.msra.mxu0 0
        %888 = vmatpush.bf16.xpose.msra.mxu0 0
        %889 = vmatpush.bf16.xpose.msra.mxu0 0
        %890 = vmatpush.bf16.xpose.msra.mxu0 0
        %891 = vmatpush.bf16.xpose.msra.mxu0 0
        %892 = vmatpush.bf16.xpose.msra.mxu0 0
        %893 = vmatpush.bf16.xpose.msra.mxu0 0
        %894 = vmatpush.bf16.xpose.msra.mxu0 %v885
        %895 = vmatmul.bf16.gmra.mxu0 %v882
        %v896 = vpop.f32.mrf.mxu0
        %v897 = vadd.f32 0.0, %v896
        %v898 = vpop.f32.mrf.mxu0
        %899 = vdwg.mxu0
        %v901 = vsel %vm842, %v833, 0
        %v904 = vsel %vm842, %v837, 0
        %906 = vmatpush.bf16.xpose.msra.mxu0 0
        %907 = vmatpush.bf16.xpose.msra.mxu0 0
        %908 = vmatpush.bf16.xpose.msra.mxu0 0
        %909 = vmatpush.bf16.xpose.msra.mxu0 0
        %910 = vmatpush.bf16.xpose.msra.mxu0 0
        %911 = vmatpush.bf16.xpose.msra.mxu0 0
        %912 = vmatpush.bf16.xpose.msra.mxu0 0
        %913 = vmatpush.bf16.xpose.msra.mxu0 %v904
        %914 = vmatmul.bf16.gmra.mxu0 %v901
        %v915 = vpop.f32.mrf.mxu0
        %v916 = vadd.f32 0.0, %v915
        %v917 = vpop.f32.mrf.mxu0
        %918 = vdwg.mxu0
        %v919 = vld [vmem:[%s332] sm:$0xf]
        %v920 = vunpack.c.l.bf16 %v919
        %v921 = vadd.f32 %v859, %v920
        %v922 = vadd.f32 %v878, %v920
        %v923 = vadd.f32 %v897, %v920
        %v924 = vadd.f32 %v916, %v920
        %vm925 = vcmask 64512
        %v926 = vsel %vm925, %v921, -inf
        %927 = vmax.xlane.f32.xlu0 %v926
        %v928 = vpop.xlane.xlu0 %927
        %v929 = vsel %vm925, %v922, -inf
        %930 = vmax.xlane.f32.xlu0 %v929
        %v931 = vpop.xlane.xlu0 %930
        %v932 = vsel %vm925, %v923, -inf
        %933 = vmax.xlane.f32.xlu0 %v932
        %v934 = vpop.xlane.xlu0 %933
        %v935 = vsel %vm925, %v924, -inf
        %936 = vmax.xlane.f32.xlu0 %v935
        %v937 = vpop.xlane.xlu0 %936
        %v938 = vsub.f32 %v921, %v928
        %v939 = vsub.f32 %v922, %v931
        %v940 = vsub.f32 %v923, %v934
        %v941 = vsub.f32 %v924, %v937
        %v942 = vmul.f32 %v938, 1.442695
        %v943 = vpow.pop %v942
        %v944 = vmul.f32 %v939, 1.442695
        %v945 = vpow.pop %v944
        %v946 = vmul.f32 %v940, 1.442695
        %v947 = vpow.pop %v946
        %v948 = vmul.f32 %v941, 1.442695
        %v949 = vpow.pop %v948
        %v950 = vsel %vm925, %v943, 0.0
        %951 = vadd.xlane.f32.xlu0 %v950
        %v952 = vpop.xlane.xlu0 %951
        %v953 = vsel %vm925, %v945, 0.0
        %954 = vadd.xlane.f32.xlu0 %v953
        %v955 = vpop.xlane.xlu0 %954
        %v956 = vsel %vm925, %v947, 0.0
        %957 = vadd.xlane.f32.xlu0 %v956
        %v958 = vpop.xlane.xlu0 %957
        %v959 = vsel %vm925, %v949, 0.0
        %960 = vadd.xlane.f32.xlu0 %v959
        %v961 = vpop.xlane.xlu0 %960
        %v962 = vrcp.pop %v952
        %v963 = vrcp.pop %v955
        %v964 = vrcp.pop %v958
        %v965 = vrcp.pop %v961
        %v966 = vmul.f32 %v943, %v962
        %v967 = vmul.f32 %v945, %v963
        %v968 = vmul.f32 %v947, %v964
        %v969 = vmul.f32 %v949, %v965
        %v970 = vpack.c.bf16 %v966, %v966
        %v971 = vpack.c.bf16 %v967, %v967
        %v972 = vpack.c.bf16 %v968, %v968
        %v973 = vpack.c.bf16 %v969, %v969
        %v975 = vsel %vm925, %v970, 0
        %vm977 = vcmask 1043456
        %v979 = vsel %vm977, %v838, 0
        %981 = vmatpush.bf16.msra.mxu0 0
        %982 = vmatpush.bf16.msra.mxu0 0
        %983 = vmatpush.bf16.msra.mxu0 0
        %984 = vmatpush.bf16.msra.mxu0 0
        %985 = vmatpush.bf16.msra.mxu0 0
        %986 = vmatpush.bf16.msra.mxu0 0
        %987 = vmatpush.bf16.msra.mxu0 0
        %988 = vmatpush.bf16.msra.mxu0 %v979
        %989 = vmatmul.bf16.gmra.mxu0 %v975
        %v990 = vpop.f32.mrf.mxu0
        %v991 = vadd.f32 0.0, %v990
        %v992 = vpop.f32.mrf.mxu0
        %993 = vdwg.mxu0
        %v995 = vsel %vm925, %v971, 0
        %v998 = vsel %vm977, %v839, 0
        %1000 = vmatpush.bf16.msra.mxu0 0
        %1001 = vmatpush.bf16.msra.mxu0 0
        %1002 = vmatpush.bf16.msra.mxu0 0
        %1003 = vmatpush.bf16.msra.mxu0 0
        %1004 = vmatpush.bf16.msra.mxu0 0
        %1005 = vmatpush.bf16.msra.mxu0 0
        %1006 = vmatpush.bf16.msra.mxu0 0
        %1007 = vmatpush.bf16.msra.mxu0 %v998
        %1008 = vmatmul.bf16.gmra.mxu0 %v995
        %v1009 = vpop.f32.mrf.mxu0
        %v1010 = vadd.f32 0.0, %v1009
        %v1011 = vpop.f32.mrf.mxu0
        %1012 = vdwg.mxu0
        %v1014 = vsel %vm925, %v972, 0
        %v1017 = vsel %vm977, %v840, 0
        %1019 = vmatpush.bf16.msra.mxu0 0
        %1020 = vmatpush.bf16.msra.mxu0 0
        %1021 = vmatpush.bf16.msra.mxu0 0
        %1022 = vmatpush.bf16.msra.mxu0 0
        %1023 = vmatpush.bf16.msra.mxu0 0
        %1024 = vmatpush.bf16.msra.mxu0 0
        %1025 = vmatpush.bf16.msra.mxu0 0
        %1026 = vmatpush.bf16.msra.mxu0 %v1017
        %1027 = vmatmul.bf16.gmra.mxu0 %v1014
        %v1028 = vpop.f32.mrf.mxu0
        %v1029 = vadd.f32 0.0, %v1028
        %v1030 = vpop.f32.mrf.mxu0
        %1031 = vdwg.mxu0
        %v1033 = vsel %vm925, %v973, 0
        %v1036 = vsel %vm977, %v841, 0
        %1038 = vmatpush.bf16.msra.mxu0 0
        %1039 = vmatpush.bf16.msra.mxu0 0
        %1040 = vmatpush.bf16.msra.mxu0 0
        %1041 = vmatpush.bf16.msra.mxu0 0
        %1042 = vmatpush.bf16.msra.mxu0 0
        %1043 = vmatpush.bf16.msra.mxu0 0
        %1044 = vmatpush.bf16.msra.mxu0 0
        %1045 = vmatpush.bf16.msra.mxu0 %v1036
        %1046 = vmatmul.bf16.gmra.mxu0 %v1033
        %v1047 = vpop.f32.mrf.mxu0
        %v1048 = vadd.f32 0.0, %v1047
        %v1049 = vpop.f32.mrf.mxu0
        %1050 = vdwg.mxu0
        %v1051 = vrot.slane %v1029, 4
        %v1052 = vsel %vm478, %v1051, %v991
        %v1053 = vrot.slane %v991, 4
        %v1054 = vsel %vm478, %v1029, %v1053
        %v1056 = vunpack.c.l.s4 1983009808
        %v1057 = vunpack.c.0.s8 %v1056
        %v1058 = vperm.slane %v1052, %v1057
        %v1060 = vunpack.c.l.s4 1983009808
        %v1061 = vunpack.c.0.s8 %v1060
        %v1062 = vperm.slane %v1054, %v1061
        %v1063 = vrot.slane %v1048, 4
        %v1064 = vsel %vm478, %v1063, %v1010
        %v1065 = vrot.slane %v1010, 4
        %v1066 = vsel %vm478, %v1048, %v1065
        %v1068 = vunpack.c.l.s4 1983009808
        %v1069 = vunpack.c.0.s8 %v1068
        %v1070 = vperm.slane %v1064, %v1069
        %v1072 = vunpack.c.l.s4 1983009808
        %v1073 = vunpack.c.0.s8 %v1072
        %v1074 = vperm.slane %v1066, %v1073
        %v1075 = vrot.slane %v1070, 4
        %v1076 = vsel %vm478, %v1075, %v1058
        %v1077 = vrot.slane %v1058, 4
        %v1078 = vsel %vm478, %v1070, %v1077
        %v1080 = vunpack.c.l.s4 1934713408
        %v1081 = vunpack.c.0.s8 %v1080
        %v1082 = vperm.slane %v1076, %v1081
        %v1084 = vunpack.c.l.s4 1934713408
        %v1085 = vunpack.c.0.s8 %v1084
        %v1086 = vperm.slane %v1078, %v1085
        %v1087 = vrot.slane %v1074, 4
        %v1088 = vsel %vm478, %v1087, %v1062
        %v1089 = vrot.slane %v1062, 4
        %v1090 = vsel %vm478, %v1074, %v1089
        %v1092 = vunpack.c.l.s4 1934713408
        %v1093 = vunpack.c.0.s8 %v1092
        %v1094 = vperm.slane %v1088, %v1093
        %v1096 = vunpack.c.l.s4 1934713408
        %v1097 = vunpack.c.0.s8 %v1096
        %v1098 = vperm.slane %v1090, %v1097
        %v1099 = vrot.slane %v1082, 4
        %v1100 = vsel %vm478, 0.0, %v1099
        %v1101 = vrot.slane %v1086, 4
        %v1102 = vsel %vm478, 0.0, %v1101
        %v1103 = vrot.slane %v1094, 4
        %v1104 = vsel %vm478, 0.0, %v1103
        %v1105 = vrot.slane %v1098, 4
        %v1106 = vsel %vm478, 0.0, %v1105
        %v1107 = vsel %vm478, %v1101, %v1082
        %v1109 = vunpack.c.l.s4 1983009808
        %v1110 = vunpack.c.0.s8 %v1109
        %v1111 = vperm.slane %v1107, %v1110
        %v1112 = vrot.slane %v1102, 4
        %v1113 = vsel %vm478, %v1112, %v1100
        %v1115 = vunpack.c.l.s4 1983009808
        %v1116 = vunpack.c.0.s8 %v1115
        %v1117 = vperm.slane %v1113, %v1116
        %v1118 = vsel %vm478, %v1105, %v1094
        %v1120 = vunpack.c.l.s4 1983009808
        %v1121 = vunpack.c.0.s8 %v1120
        %v1122 = vperm.slane %v1118, %v1121
        %v1123 = vrot.slane %v1106, 4
        %v1124 = vsel %vm478, %v1123, %v1104
        %v1126 = vunpack.c.l.s4 1983009808
        %v1127 = vunpack.c.0.s8 %v1126
        %v1128 = vperm.slane %v1124, %v1127
        %v1129 = vrot.slane %v1117, 4
        %v1130 = vsel %vm478, %v1129, %v1111
        %v1131 = vrot.slane %v1111, 4
        %v1132 = vsel %vm478, %v1117, %v1131
        %v1134 = vunpack.c.l.s4 1934713408
        %v1135 = vunpack.c.0.s8 %v1134
        %v1136 = vperm.slane %v1130, %v1135
        %v1138 = vunpack.c.l.s4 1934713408
        %v1139 = vunpack.c.0.s8 %v1138
        %v1140 = vperm.slane %v1132, %v1139
        %v1141 = vrot.slane %v1128, 4
        %v1142 = vsel %vm478, %v1141, %v1122
        %v1143 = vrot.slane %v1122, 4
        %v1144 = vsel %vm478, %v1128, %v1143
        %v1146 = vunpack.c.l.s4 1934713408
        %v1147 = vunpack.c.0.s8 %v1146
        %v1148 = vperm.slane %v1142, %v1147
        %v1150 = vunpack.c.l.s4 1934713408
        %v1151 = vunpack.c.0.s8 %v1150
        %v1152 = vperm.slane %v1144, %v1151
        %v1153 = vrot.slane %v1148, 4
        %v1154 = vsel %vm478, %v1153, %v1136
        %v1155 = vrot.slane %v1136, 4
        %v1156 = vsel %vm478, %v1148, %v1155
        %v1157 = vrot.slane %v1152, 4
        %v1158 = vsel %vm478, %v1157, %v1140
        %v1159 = vrot.slane %v1140, 4
        %v1160 = vsel %vm478, %v1152, %v1159
        %1162 = vrot.lane.b32.xlu0 %v1156, 16
        %v1163 = vpop.permute.xlu0 %1162
        %1166 = vrot.lane.b32.xlu0 %v1158, 32
        %v1167 = vpop.permute.xlu0 %1166
        %1170 = vrot.lane.b32.xlu0 %v1160, 48
        %v1171 = vpop.permute.xlu0 %1170
        %v1173 = vsel %vm842, %v1154, %v1163
        %v1174 = vsel %vm407, %v1173, %v1167
        %vm1175 = vcmask 392192
        %v1176 = vsel %vm1175, %v1174, %v1171
        %v1177 = vpack.c.bf16 %v1176, %v1176
        %v1178 = vld [vmem:[%s5] sm:$0xf]
        %v1179 = vld [vmem:[%s5 + $0x4] sm:$0xf]
        %v1180 = vld [vmem:[%s5 + $0x8] sm:$0xf]
        %v1181 = vld [vmem:[%s5 + $0xc] sm:$0xf]
        %v1182 = vld [vmem:[%s5 + $0x10] sm:$0xf]
        %v1183 = vld [vmem:[%s5 + $0x14] sm:$0xf]
        %v1184 = vld [vmem:[%s5 + $0x18] sm:$0xf]
        %v1185 = vld [vmem:[%s5 + $0x1c] sm:$0xf]
        %v1186 = vld [vmem:[%s6] sm:$0x1]
        %v1188 = vperm.slane %v1186, 0
        %v1198 = vunpack.c.l.b16 %v1178
        %v1199 = vunpack.c.l.b16 %v1179
        %v1200 = vunpack.c.l.b16 %v1180
        %v1201 = vunpack.c.l.b16 %v1181
        %v1202 = vunpack.c.l.b16 %v1182
        %v1203 = vunpack.c.l.b16 %v1183
        %v1204 = vunpack.c.l.b16 %v1184
        %v1205 = vunpack.c.l.b16 %v1185
        %v1206 = vpack.c.b16 %v1199, %v1198
        %v1207 = vpack.c.b16 %v1201, %v1200
        %v1208 = vpack.c.b16 %v1203, %v1202
        %v1209 = vpack.c.b16 %v1205, %v1204
        %v1215 = vsel %vm448, %v1177, 0
        %1217 = vmatpush.bf16.msra.mxu0 0
        %1218 = vmatpush.bf16.msra.mxu0 0
        %1219 = vmatpush.bf16.msra.mxu0 0
        %1220 = vmatpush.bf16.msra.mxu0 0
        %1221 = vmatpush.bf16.msra.mxu0 %v1209
        %1222 = vmatpush.bf16.msra.mxu0 %v1208
        %1223 = vmatpush.bf16.msra.mxu0 %v1207
        %1224 = vmatpush.bf16.msra.mxu0 %v1206
        %1225 = vmatmul.bf16.gmra.mxu0 %v1215
        %v1226 = vpop.f32.mrf.mxu0
        %v1227 = vadd.f32 %v1188, %v1226
        %v1228 = vpop.f32.mrf.mxu0
        %1229 = vdwg.mxu0
        %v1230 = vunpack.c.l.bf16 %v385
        %v1231 = vadd.f32 %v1227, %v1230
        %v1232 = vsel %vm407, %v1231, 0.0
        %1233 = vadd.xlane.f32.xlu0 %v1232
        %v1234 = vpop.xlane.xlu0 %1233
        %v1235 = vrcp.pop 32.0
        %v1236 = vmul.f32 32.0, %v1235
        %v1237 = vsub.f32 1.0, %v1236
        %v1238 = vmul.f32 %v1235, %v1237
        %v1239 = vadd.f32 %v1235, %v1238
        %vm1240 = vweird.f32 %v1235
        %v1241 = vsel %vm1240, %v1235, %v1239
        %v1242 = vmul.f32 %v1234, %v1241
        %v1243 = vsub.f32 %v1231, %v1242
        %v1244 = vmul.f32 %v1243, %v1243
        %v1245 = vsel %vm407, %v1244, 0.0
        %1246 = vadd.xlane.f32.xlu0 %v1245
        %v1247 = vpop.xlane.xlu0 %1246
        %v1248 = vmul.f32 %v1247, %v1241
        %v1249 = vadd.f32 %v1248, 1e-05
        %v1250 = vrsqrt.pop %v1249
        %v1251 = vmul.f32 %v1250, %v1249
        %v1252 = vmul.f32 %v1251, %v1250
        %v1253 = vmul.f32 0.5, %v1252
        %v1254 = vsub.f32 1.5, %v1253
        %v1255 = vmul.f32 %v1250, %v1254
        %vm1256 = vweird.f32 %v1249
        %vm1257 = vweird.f32 %v1250
        %vm1258 = vmor %vm1256, %vm1257
        %v1259 = vsel %vm1258, %v1250, %v1255
        %v1260 = vmul.f32 %v1243, %v1259
        %v1261 = vld [vmem:[%s7] sm:$0x1]
        %v1263 = vperm.slane %v1261, 0
        %v1265 = vmul.f32 %v1260, %v1263
        %v1266 = vld [vmem:[%s8] sm:$0x1]
        %v1268 = vperm.slane %v1266, 0
        %v1270 = vadd.f32 %v1265, %v1268
        %1271 = vst.msk [vmem:[%s375] sm:$0xff] %vm407, %v1270
        %s1272 = sand.u32 %s238, 1
        %s1273 = scalar_lea.sflag [#allocation4], %s1272
        %s1274 = sand.u32 %s238, 1
        %s1275 = smul.addr %s1274, 8
        %s1276 = scalar_lea.vmem [#allocation5], %s1275
        // Predicated region
        $region61: #{tpu_custom_call.1} parent=55 // pred_check
          %p1277 = pneg %p248
        $region62: #{tpu_custom_call.1} parent=55 // pred_check_branch
          %1279 = sbr.rel (%p1277) target = $region64
        $region63: #{tpu_custom_call.1} parent=55 // pred_region
          %1281 = vsyncadd %s1273, 0
          %s1282 = smul.addr %s26, 8
          %s1283 = scalar_lea.hbm %s9, %s1282
          %s1285 = sshll.u32 %s1276, 4
          %s1286 = int_to_ptr.vmem [resolvable:$true] %s1285
          %s1287 = sshll.u32 %s1283, 4
          %s1288 = int_to_ptr.hbm [resolvable:$true] %s1287
          %1290 = dma.vmem_to_hbm [thread:$0]  %s1286, 128, %s1288, %s1273
        $region64: #{tpu_custom_call.1} parent=55 // pred_fallthru
          _
      $region56: #{tpu_custom_call.1} parent=5 // pred_fallthru
        _
      %p1291 = scmp.le.s32.totalorder 2, %s21
      // Predicated region
      $region65: #{tpu_custom_call.1} parent=5 // pred_check
        %p1292 = pneg %p1291
      $region66: #{tpu_custom_call.1} parent=5 // pred_check_branch
        %1294 = sbr.rel (%p1292) target = $region68
      $region67: #{tpu_custom_call.1} parent=5 // pred_region
        %s1295 = ssub.s32 %s21, 2
        // Predicated region
        $region69: #{tpu_custom_call.1} parent=67 // pred_check
          %p1296 = pneg %p254
        $region70: #{tpu_custom_call.1} parent=67 // pred_check_branch
          %1298 = sbr.rel (%p1296) target = $region72
        $region71: #{tpu_custom_call.1} parent=67 // pred_region
          %s1299 = sand.u32 %s239, 1
          %s1300 = scalar_lea.sflag [#allocation4], %s1299
          %s1301 = sand.u32 %s239, 1
          %s1302 = smul.addr %s1301, 8
          %s1303 = scalar_lea.vmem [#allocation5], %s1302
          %1305 = dma.done %s1300, 128
        $region72: #{tpu_custom_call.1} parent=67 // pred_fallthru
          _
      $region68: #{tpu_custom_call.1} parent=5 // pred_fallthru
        _
    $region6: #{tpu_custom_call.1} parent=1 // loop_footer
      %s25 = sadd.s32 1, %s21
    $region7: #{tpu_custom_call.1} parent=1 // loop_footer_branch
      %20 = sbr.rel target = $region3
    $region8: #{tpu_custom_call.1} parent=1 // loop_exit
      _
    %1306 = vsyncpa [#allocation3], 1
    %s1307 = scalar_lea.sflag [#allocation3], 1
    %1308 = vsyncpa %s1307, 1
    %1309 = vsyncpa [#allocation4], 1
    %s1310 = scalar_lea.sflag [#allocation4], 1
    %1311 = vsyncpa %s1310, 1

</llo_original>
